<compile_context>
chip_gen: v5e
topology: v5e:2x2
jax: 0.10.0
libtpu: 0.0.40
codegen_flags: <defaults>
</compile_context>

<pallas_src>
import jax
import jax.numpy as jnp
import numpy as np
from jax.experimental import pallas as pl
from jax.experimental.pallas import tpu as pltpu


# -------------------- kernel --------------------
def make_gate_decoder_kernel(n_layers, Hp):
    def kernel(emb_ref, h_ref, asp_ref, *refs):
        gru_refs = refs[: 5 * n_layers]
        (w1_ref, w2_ref, b12_ref, wfc_ref, bfc_ref) = refs[
            5 * n_layers : 5 * n_layers + 5
        ]
        pred_ref, hnew_ref = refs[5 * n_layers + 5 : 5 * n_layers + 7]
        vec_sc = refs[5 * n_layers + 7]

        # GRU step + input-gate fusion run once (grid step 0); the gated vector
        # is kept in VMEM scratch and reused by every fc_out vocab tile.
        @pl.when(pl.program_id(0) == 0)
        def _():
            x = emb_ref[...]                                   # (B, Dp) f32
            for l in range(n_layers):                          # static unroll
                wih, whh, b_rz, bihn, bhhn = gru_refs[5 * l : 5 * l + 5]
                h_prev = h_ref[l]                              # (B, Hp) f32
                gi = jnp.dot(x.astype(jnp.bfloat16), wih[...],
                             preferred_element_type=jnp.float32)      # (B, 3Hp)
                gh = jnp.dot(h_prev.astype(jnp.bfloat16), whh[...],
                             preferred_element_type=jnp.float32)      # (B, 3Hp)
                rz = jax.nn.sigmoid(gi[:, : 2 * Hp] + gh[:, : 2 * Hp] + b_rz[...])
                r = rz[:, :Hp]
                z = rz[:, Hp:]
                n = jnp.tanh(gi[:, 2 * Hp :] + bihn[...]
                             + r * (gh[:, 2 * Hp :] + bhhn[...]))
                h_new = (1.0 - z) * n + z * h_prev
                hnew_ref[l] = h_new
                x = h_new                                      # input to next layer

            # get_input_gate: g1 = sigmoid(linear1(h) + linear2(asp)), fused bias
            asp = asp_ref[...]
            g1 = jax.nn.sigmoid(
                jnp.dot(x.astype(jnp.bfloat16), w1_ref[...],
                        preferred_element_type=jnp.float32)
                + jnp.dot(asp.astype(jnp.bfloat16), w2_ref[...],
                          preferred_element_type=jnp.float32)
                + b12_ref[...]
            )
            vec = g1 * x + (1.0 - g1) * asp
            vec_sc[...] = vec.astype(jnp.bfloat16)

        # fc_out projection, tiled over the vocab (grid axis 0).
        pred_ref[...] = (
            jnp.dot(vec_sc[...], wfc_ref[...], preferred_element_type=jnp.float32)
            + bfc_ref[...]
        )

    return kernel


# -------------------- wrapper --------------------
def _round_up(n, m):
    return (n + m - 1) // m * m


def _pad2(a, rows, cols):
    r, c = a.shape
    return jnp.pad(a, ((0, rows - r), (0, cols - c)))


def gate_decoder_forward(inp_tokens, hidden, asp_vector, params, *,
                         hidden_type="gate", c_tile_cap=512):
    # TODO(synk): only the 'gate' hidden_type path is wired up; 'cat'/'asp'/'hidden'
    # variants and the (inference no-op) nn.Dropout are not implemented in-kernel.
    assert hidden_type == "gate"

    # Embedding lookup (gather) is glue, not the hot path.
    emb = params["emb_w"][inp_tokens]                     # (B, cate_dim) f32
    n_layers, B, H = hidden.shape
    D = emb.shape[1]
    C = params["wfc"].shape[1]

    f32, bf16 = jnp.float32, jnp.bfloat16
    Bp = _round_up(B, 8)
    Hp = _round_up(H, 128)
    Dp = _round_up(D, 128)
    Cp = _round_up(C, 128)
    TN = min(Cp, c_tile_cap)
    while Cp % TN:
        TN -= 128

    emb_p = jnp.pad(emb.astype(f32), ((0, Bp - B), (0, Dp - D)))
    asp_p = jnp.pad(asp_vector.astype(f32), ((0, Bp - B), (0, Hp - H)))
    hid_p = jnp.pad(hidden.astype(f32), ((0, 0), (0, Bp - B), (0, Hp - H)))

    flat = []
    in_specs = [
        pl.BlockSpec((Bp, Dp), lambda j: (0, 0)),
        pl.BlockSpec((n_layers, Bp, Hp), lambda j: (0, 0, 0)),
        pl.BlockSpec((Bp, Hp), lambda j: (0, 0)),
    ]

    for l in range(n_layers):
        wih, whh, bih, bhh = params["gru"][l]             # [r, z, n] stacked
        in_p = Dp if l == 0 else Hp
        wih_cat = jnp.concatenate(
            [_pad2(wih[g], in_p, Hp) for g in range(3)], axis=1).astype(bf16)
        whh_cat = jnp.concatenate(
            [_pad2(whh[g], Hp, Hp) for g in range(3)], axis=1).astype(bf16)
        b_rz = jnp.concatenate(
            [_pad2(bih[0] + bhh[0], 1, Hp), _pad2(bih[1] + bhh[1], 1, Hp)],
            axis=1).astype(f32)
        bihn = _pad2(bih[2], 1, Hp).astype(f32)
        bhhn = _pad2(bhh[2], 1, Hp).astype(f32)
        flat += [wih_cat, whh_cat, b_rz, bihn, bhhn]
        in_specs += [
            pl.BlockSpec((in_p, 3 * Hp), lambda j: (0, 0)),
            pl.BlockSpec((Hp, 3 * Hp), lambda j: (0, 0)),
            pl.BlockSpec((1, 2 * Hp), lambda j: (0, 0)),
            pl.BlockSpec((1, Hp), lambda j: (0, 0)),
            pl.BlockSpec((1, Hp), lambda j: (0, 0)),
        ]

    w1p = _pad2(params["w1"], Hp, Hp).astype(bf16)
    w2p = _pad2(params["w2"], Hp, Hp).astype(bf16)
    b12p = _pad2(params["b1"] + params["b2"], 1, Hp).astype(f32)
    wfcp = _pad2(params["wfc"], Hp, Cp).astype(bf16)
    bfcp = _pad2(params["bfc"], 1, Cp).astype(f32)
    flat += [w1p, w2p, b12p, wfcp, bfcp]
    in_specs += [
        pl.BlockSpec((Hp, Hp), lambda j: (0, 0)),
        pl.BlockSpec((Hp, Hp), lambda j: (0, 0)),
        pl.BlockSpec((1, Hp), lambda j: (0, 0)),
        pl.BlockSpec((Hp, TN), lambda j: (0, j)),
        pl.BlockSpec((1, TN), lambda j: (0, j)),
    ]

    # ---- cost estimate / VMEM budget ----
    flops = 0
    for l in range(n_layers):
        in_p = Dp if l == 0 else Hp
        flops += 2 * Bp * in_p * 3 * Hp + 2 * Bp * Hp * 3 * Hp
    flops += 2 * 2 * Bp * Hp * Hp           # linear1 + linear2
    flops += 2 * Bp * Hp * Cp               # fc_out
    transcendentals = Bp * Hp * (3 * n_layers + 1)
    operand_bytes = sum(int(np.prod(a.shape)) * a.dtype.itemsize
                        for a in [emb_p, hid_p, asp_p] + flat)
    out_bytes = Bp * Cp * 4 + n_layers * Bp * Hp * 4
    bytes_accessed = operand_bytes + out_bytes
    vmem_limit = int(min(max(2 * bytes_accessed + (2 << 20), 4 << 20), 64 << 20))

    kernel = make_gate_decoder_kernel(n_layers, Hp)

    pred_p, hnew_p = pl.pallas_call(
        kernel,
        out_shape=(
            jax.ShapeDtypeStruct((Bp, Cp), jnp.float32),
            jax.ShapeDtypeStruct((n_layers, Bp, Hp), jnp.float32),
        ),
        grid_spec=pltpu.PrefetchScalarGridSpec(
            num_scalar_prefetch=0,
            grid=(Cp // TN,),
            in_specs=in_specs,
            out_specs=(
                pl.BlockSpec((Bp, TN), lambda j: (0, j)),
                pl.BlockSpec((n_layers, Bp, Hp), lambda j: (0, 0, 0)),
            ),
            scratch_shapes=[pltpu.VMEM((Bp, Hp), jnp.bfloat16)],
        ),
        compiler_params=pltpu.CompilerParams(
            dimension_semantics=("arbitrary",),   # vec scratch carried across vocab tiles
            vmem_limit_bytes=vmem_limit,
        ),
        cost_estimate=pl.CostEstimate(
            flops=int(flops),
            transcendentals=int(transcendentals),
            bytes_accessed=int(bytes_accessed),
        ),
    )(emb_p, hid_p, asp_p, *flat)

    return pred_p[:B, :C], hnew_p[:, :B, :H]


# -------------------- deterministic parameter init --------------------
def init_params(key, num_category, cate_dim, hidden_dim, n_layers):
    def xavier(k, shape):
        fan_in, fan_out = shape[-2], shape[-1]
        bound = (6.0 / (fan_in + fan_out)) ** 0.5
        return jax.random.uniform(k, shape, jnp.float32, -bound, bound)

    keys = iter(jax.random.split(key, 8 + 8 * n_layers))
    emb_w = xavier(next(keys), (num_category, cate_dim))
    emb_w = emb_w.at[0].set(0.0)      # padding_idx = 0

    gru = []
    for l in range(n_layers):
        in_dim = cate_dim if l == 0 else hidden_dim
        wih = xavier(next(keys), (3, in_dim, hidden_dim))        # [r, z, n]
        whh = xavier(next(keys), (3, hidden_dim, hidden_dim))
        bih = 0.01 * jax.random.normal(next(keys), (3, 1, hidden_dim), jnp.float32)
        bhh = 0.01 * jax.random.normal(next(keys), (3, 1, hidden_dim), jnp.float32)
        gru.append((wih, whh, bih, bhh))

    w1 = xavier(next(keys), (hidden_dim, hidden_dim))
    b1 = 0.01 * jax.random.normal(next(keys), (1, hidden_dim), jnp.float32)
    w2 = xavier(next(keys), (hidden_dim, hidden_dim))
    b2 = 0.01 * jax.random.normal(next(keys), (1, hidden_dim), jnp.float32)
    wfc = xavier(next(keys), (hidden_dim, num_category))
    bfc = 0.01 * jax.random.normal(next(keys), (1, num_category), jnp.float32)

    return dict(emb_w=emb_w, gru=gru, w1=w1, b1=b1, w2=w2, b2=b2, wfc=wfc, bfc=bfc)


# -------------------- pure-JAX f32 reference (mirrors PyTorch math) --------------------
def reference_forward(inp_tokens, hidden, asp_vector, params):
    x = params["emb_w"][inp_tokens]
    n_layers = hidden.shape[0]
    hs = []
    for l in range(n_layers):
        wih, whh, bih, bhh = params["gru"][l]
        h_prev = hidden[l]
        gi = [x @ wih[g] + bih[g] for g in range(3)]
        gh = [h_prev @ whh[g] + bhh[g] for g in range(3)]
        r = jax.nn.sigmoid(gi[0] + gh[0])
        z = jax.nn.sigmoid(gi[1] + gh[1])
        n = jnp.tanh(gi[2] + r * gh[2])
        h_new = (1.0 - z) * n + z * h_prev
        hs.append(h_new)
        x = h_new
    h_stack = jnp.stack(hs)
    asp = asp_vector
    g1 = jax.nn.sigmoid(x @ params["w1"] + params["b1"] + asp @ params["w2"] + params["b2"])
    vec = g1 * x + (1.0 - g1) * asp
    pred = vec @ params["wfc"] + params["bfc"]
    return pred, h_stack


if __name__ == "__main__":
    num_category, cate_dim, hidden_dim, n_layers = 32, 16, 32, 2
    batch = 8

    root = jax.random.PRNGKey(0)
    k_p, k_tok, k_h, k_asp = jax.random.split(root, 4)

    params = init_params(k_p, num_category, cate_dim, hidden_dim, n_layers)
    inp_tokens = jax.random.randint(k_tok, (batch,), 0, num_category, dtype=jnp.int32)
    hidden0 = jax.random.normal(k_h, (n_layers, batch, hidden_dim), jnp.float32)
    asp_vec = jax.random.normal(k_asp, (batch, hidden_dim), jnp.float32)

    pred, hidden_new = gate_decoder_forward(inp_tokens, hidden0, asp_vec, params)
    pred = jax.block_until_ready(pred)
    hidden_new = jax.block_until_ready(hidden_new)

    # Tolerances loosened vs v1: kernel uses bf16 matmul operands (f32 accumulation).
    pred_ref, hidden_ref = reference_forward(inp_tokens, hidden0, asp_vec, params)
    np.testing.assert_allclose(np.asarray(pred), np.asarray(pred_ref), atol=5e-2, rtol=5e-2)
    np.testing.assert_allclose(np.asarray(hidden_new), np.asarray(hidden_ref), atol=5e-2, rtol=5e-2)

    print("KERNEL_OK")
</pallas_src>

<mosaic_0001>
module attributes {stable_mosaic.version = 11 : i64} {
  func.func @kernel(%arg0: i32, %arg1: memref<8x128xf32, #tpu.memory_space<vmem>>, %arg2: memref<2x8x128xf32, #tpu.memory_space<vmem>>, %arg3: memref<8x128xf32, #tpu.memory_space<vmem>>, %arg4: memref<128x384xbf16, #tpu.memory_space<vmem>>, %arg5: memref<128x384xbf16, #tpu.memory_space<vmem>>, %arg6: memref<1x256xf32, #tpu.memory_space<vmem>>, %arg7: memref<1x128xf32, #tpu.memory_space<vmem>>, %arg8: memref<1x128xf32, #tpu.memory_space<vmem>>, %arg9: memref<128x384xbf16, #tpu.memory_space<vmem>>, %arg10: memref<128x384xbf16, #tpu.memory_space<vmem>>, %arg11: memref<1x256xf32, #tpu.memory_space<vmem>>, %arg12: memref<1x128xf32, #tpu.memory_space<vmem>>, %arg13: memref<1x128xf32, #tpu.memory_space<vmem>>, %arg14: memref<128x128xbf16, #tpu.memory_space<vmem>>, %arg15: memref<128x128xbf16, #tpu.memory_space<vmem>>, %arg16: memref<1x128xf32, #tpu.memory_space<vmem>>, %arg17: memref<128x128xbf16, #tpu.memory_space<vmem>>, %arg18: memref<1x128xf32, #tpu.memory_space<vmem>>, %arg19: memref<8x128xf32, #tpu.memory_space<vmem>>, %arg20: memref<2x8x128xf32, #tpu.memory_space<vmem>>, %arg21: memref<8x128xbf16, #tpu.memory_space<vmem>>) attributes {dimension_semantics = [#tpu.dimension_semantics<arbitrary>], iteration_bounds = array<i64: 1>, scalar_prefetch = 0 : i64, scratch_operands = 1 : i64, tpu.core_type = #tpu.core_type<tc>, window_params = [{pipeline_mode = #tpu.pipeline_mode<synchronous>, transform_indices = @transform_0, window_bounds = array<i64: 8, 128>}, {pipeline_mode = #tpu.pipeline_mode<synchronous>, transform_indices = @transform_1, window_bounds = array<i64: 2, 8, 128>}, {pipeline_mode = #tpu.pipeline_mode<synchronous>, transform_indices = @transform_2, window_bounds = array<i64: 8, 128>}, {pipeline_mode = #tpu.pipeline_mode<synchronous>, transform_indices = @transform_3, window_bounds = array<i64: 128, 384>}, {pipeline_mode = #tpu.pipeline_mode<synchronous>, transform_indices = @transform_4, window_bounds = array<i64: 128, 384>}, {pipeline_mode = #tpu.pipeline_mode<synchronous>, transform_indices = @transform_5, window_bounds = array<i64: 1, 256>}, {pipeline_mode = #tpu.pipeline_mode<synchronous>, transform_indices = @transform_6, window_bounds = array<i64: 1, 128>}, {pipeline_mode = #tpu.pipeline_mode<synchronous>, transform_indices = @transform_7, window_bounds = array<i64: 1, 128>}, {pipeline_mode = #tpu.pipeline_mode<synchronous>, transform_indices = @transform_8, window_bounds = array<i64: 128, 384>}, {pipeline_mode = #tpu.pipeline_mode<synchronous>, transform_indices = @transform_9, window_bounds = array<i64: 128, 384>}, {pipeline_mode = #tpu.pipeline_mode<synchronous>, transform_indices = @transform_10, window_bounds = array<i64: 1, 256>}, {pipeline_mode = #tpu.pipeline_mode<synchronous>, transform_indices = @transform_11, window_bounds = array<i64: 1, 128>}, {pipeline_mode = #tpu.pipeline_mode<synchronous>, transform_indices = @transform_12, window_bounds = array<i64: 1, 128>}, {pipeline_mode = #tpu.pipeline_mode<synchronous>, transform_indices = @transform_13, window_bounds = array<i64: 128, 128>}, {pipeline_mode = #tpu.pipeline_mode<synchronous>, transform_indices = @transform_14, window_bounds = array<i64: 128, 128>}, {pipeline_mode = #tpu.pipeline_mode<synchronous>, transform_indices = @transform_15, window_bounds = array<i64: 1, 128>}, {transform_indices = @transform_16, window_bounds = array<i64: 128, 128>}, {transform_indices = @transform_17, window_bounds = array<i64: 1, 128>}, {transform_indices = @transform_18, window_bounds = array<i64: 8, 128>}, {pipeline_mode = #tpu.pipeline_mode<synchronous>, transform_indices = @transform_19, window_bounds = array<i64: 2, 8, 128>}]} {
    %c0_i32 = arith.constant 0 : i32
    %0 = arith.cmpi eq, %arg0, %c0_i32 : i32
    %1 = arith.extui %0 : i1 to i32
    %c0_i32_0 = arith.constant 0 : i32
    %2 = arith.cmpi ne, %1, %c0_i32_0 : i32
    scf.if %2 {
      %c0_8 = arith.constant 0 : index
      %c0_9 = arith.constant 0 : index
      %10 = vector.load %arg1[%c0_8, %c0_9] : memref<8x128xf32, #tpu.memory_space<vmem>>, vector<8x128xf32>
      %c0_10 = arith.constant 0 : index
      %c0_11 = arith.constant 0 : index
      %c0_12 = arith.constant 0 : index
      %11 = vector.load %arg2[%c0_10, %c0_11, %c0_12] : memref<2x8x128xf32, #tpu.memory_space<vmem>>, vector<1x8x128xf32>
      %12 = vector.shape_cast %11 : vector<1x8x128xf32> to vector<8x128xf32>
      %13 = arith.truncf %10 : vector<8x128xf32> to vector<8x128xbf16>
      %c0_13 = arith.constant 0 : index
      %c0_14 = arith.constant 0 : index
      %14 = vector.load %arg4[%c0_13, %c0_14] : memref<128x384xbf16, #tpu.memory_space<vmem>>, vector<128x384xbf16>
      %cst_15 = arith.constant dense<0.000000e+00> : vector<8x384xf32>
      %15 = tpu.matmul %13, %14, %cst_15 {dimension_numbers = #tpu.dot_dimension_numbers<[1], [0], [0], [1], [0, 0, 1, 1], [], []>} : vector<8x128xbf16>, vector<128x384xbf16>, vector<8x384xf32> -> vector<8x384xf32>
      %16 = arith.truncf %12 : vector<8x128xf32> to vector<8x128xbf16>
      %c0_16 = arith.constant 0 : index
      %c0_17 = arith.constant 0 : index
      %17 = vector.load %arg5[%c0_16, %c0_17] : memref<128x384xbf16, #tpu.memory_space<vmem>>, vector<128x384xbf16>
      %cst_18 = arith.constant dense<0.000000e+00> : vector<8x384xf32>
      %18 = tpu.matmul %16, %17, %cst_18 {dimension_numbers = #tpu.dot_dimension_numbers<[1], [0], [0], [1], [0, 0, 1, 1], [], []>} : vector<8x128xbf16>, vector<128x384xbf16>, vector<8x384xf32> -> vector<8x384xf32>
      %19 = vector.extract_strided_slice %15 {offsets = [0, 0], sizes = [8, 256], strides = [1, 1]} : vector<8x384xf32> to vector<8x256xf32>
      %20 = vector.extract_strided_slice %18 {offsets = [0, 0], sizes = [8, 256], strides = [1, 1]} : vector<8x384xf32> to vector<8x256xf32>
      %21 = arith.addf %19, %20 : vector<8x256xf32>
      %c0_19 = arith.constant 0 : index
      %c0_20 = arith.constant 0 : index
      %22 = vector.load %arg6[%c0_19, %c0_20] : memref<1x256xf32, #tpu.memory_space<vmem>>, vector<1x256xf32>
      %23 = vector.broadcast %22 : vector<1x256xf32> to vector<8x256xf32>
      %24 = arith.addf %21, %23 : vector<8x256xf32>
      %25 = arith.negf %24 : vector<8x256xf32>
      %26 = math.exp %25 : vector<8x256xf32>
      %cst_21 = arith.constant 1.000000e+00 : f32
      %27 = vector.broadcast %cst_21 : f32 to vector<8x256xf32>
      %28 = arith.addf %27, %26 : vector<8x256xf32>
      %29 = arith.divf %27, %28 : vector<8x256xf32>
      %30 = vector.extract_strided_slice %29 {offsets = [0, 0], sizes = [8, 128], strides = [1, 1]} : vector<8x256xf32> to vector<8x128xf32>
      %31 = vector.extract_strided_slice %29 {offsets = [0, 128], sizes = [8, 128], strides = [1, 1]} : vector<8x256xf32> to vector<8x128xf32>
      %32 = vector.extract_strided_slice %15 {offsets = [0, 256], sizes = [8, 128], strides = [1, 1]} : vector<8x384xf32> to vector<8x128xf32>
      %c0_22 = arith.constant 0 : index
      %c0_23 = arith.constant 0 : index
      %33 = vector.load %arg7[%c0_22, %c0_23] : memref<1x128xf32, #tpu.memory_space<vmem>>, vector<1x128xf32>
      %34 = vector.broadcast %33 : vector<1x128xf32> to vector<8x128xf32>
      %35 = arith.addf %32, %34 : vector<8x128xf32>
      %36 = vector.extract_strided_slice %18 {offsets = [0, 256], sizes = [8, 128], strides = [1, 1]} : vector<8x384xf32> to vector<8x128xf32>
      %c0_24 = arith.constant 0 : index
      %c0_25 = arith.constant 0 : index
      %37 = vector.load %arg8[%c0_24, %c0_25] : memref<1x128xf32, #tpu.memory_space<vmem>>, vector<1x128xf32>
      %38 = vector.broadcast %37 : vector<1x128xf32> to vector<8x128xf32>
      %39 = arith.addf %36, %38 : vector<8x128xf32>
      %40 = arith.mulf %30, %39 : vector<8x128xf32>
      %41 = arith.addf %35, %40 : vector<8x128xf32>
      %42 = math.tanh %41 : vector<8x128xf32>
      %cst_26 = arith.constant 1.000000e+00 : f32
      %43 = vector.broadcast %cst_26 : f32 to vector<8x128xf32>
      %44 = arith.subf %43, %31 : vector<8x128xf32>
      %45 = arith.mulf %44, %42 : vector<8x128xf32>
      %46 = arith.mulf %31, %12 : vector<8x128xf32>
      %47 = arith.addf %45, %46 : vector<8x128xf32>
      %c0_27 = arith.constant 0 : index
      %c0_28 = arith.constant 0 : index
      %c0_29 = arith.constant 0 : index
      %48 = vector.load %arg20[%c0_27, %c0_28, %c0_29] : memref<2x8x128xf32, #tpu.memory_space<vmem>>, vector<1x8x128xf32>
      %49 = vector.shape_cast %48 : vector<1x8x128xf32> to vector<8x128xf32>
      %50 = vector.shape_cast %47 : vector<8x128xf32> to vector<1x8x128xf32>
      tpu.vector_store %arg20[%c0_27, %c0_28, %c0_29], %50 {strides = array<i32>} : memref<2x8x128xf32, #tpu.memory_space<vmem>>, vector<1x8x128xf32>,
      %c1 = arith.constant 1 : index
      %c0_30 = arith.constant 0 : index
      %c0_31 = arith.constant 0 : index
      %51 = vector.load %arg2[%c1, %c0_30, %c0_31] : memref<2x8x128xf32, #tpu.memory_space<vmem>>, vector<1x8x128xf32>
      %52 = vector.shape_cast %51 : vector<1x8x128xf32> to vector<8x128xf32>
      %53 = arith.truncf %47 : vector<8x128xf32> to vector<8x128xbf16>
      %c0_32 = arith.constant 0 : index
      %c0_33 = arith.constant 0 : index
      %54 = vector.load %arg9[%c0_32, %c0_33] : memref<128x384xbf16, #tpu.memory_space<vmem>>, vector<128x384xbf16>
      %cst_34 = arith.constant dense<0.000000e+00> : vector<8x384xf32>
      %55 = tpu.matmul %53, %54, %cst_34 {dimension_numbers = #tpu.dot_dimension_numbers<[1], [0], [0], [1], [0, 0, 1, 1], [], []>} : vector<8x128xbf16>, vector<128x384xbf16>, vector<8x384xf32> -> vector<8x384xf32>
      %56 = arith.truncf %52 : vector<8x128xf32> to vector<8x128xbf16>
      %c0_35 = arith.constant 0 : index
      %c0_36 = arith.constant 0 : index
      %57 = vector.load %arg10[%c0_35, %c0_36] : memref<128x384xbf16, #tpu.memory_space<vmem>>, vector<128x384xbf16>
      %cst_37 = arith.constant dense<0.000000e+00> : vector<8x384xf32>
      %58 = tpu.matmul %56, %57, %cst_37 {dimension_numbers = #tpu.dot_dimension_numbers<[1], [0], [0], [1], [0, 0, 1, 1], [], []>} : vector<8x128xbf16>, vector<128x384xbf16>, vector<8x384xf32> -> vector<8x384xf32>
      %59 = vector.extract_strided_slice %55 {offsets = [0, 0], sizes = [8, 256], strides = [1, 1]} : vector<8x384xf32> to vector<8x256xf32>
      %60 = vector.extract_strided_slice %58 {offsets = [0, 0], sizes = [8, 256], strides = [1, 1]} : vector<8x384xf32> to vector<8x256xf32>
      %61 = arith.addf %59, %60 : vector<8x256xf32>
      %c0_38 = arith.constant 0 : index
      %c0_39 = arith.constant 0 : index
      %62 = vector.load %arg11[%c0_38, %c0_39] : memref<1x256xf32, #tpu.memory_space<vmem>>, vector<1x256xf32>
      %63 = vector.broadcast %62 : vector<1x256xf32> to vector<8x256xf32>
      %64 = arith.addf %61, %63 : vector<8x256xf32>
      %65 = arith.negf %64 : vector<8x256xf32>
      %66 = math.exp %65 : vector<8x256xf32>
      %cst_40 = arith.constant 1.000000e+00 : f32
      %67 = vector.broadcast %cst_40 : f32 to vector<8x256xf32>
      %68 = arith.addf %67, %66 : vector<8x256xf32>
      %69 = arith.divf %67, %68 : vector<8x256xf32>
      %70 = vector.extract_strided_slice %69 {offsets = [0, 0], sizes = [8, 128], strides = [1, 1]} : vector<8x256xf32> to vector<8x128xf32>
      %71 = vector.extract_strided_slice %69 {offsets = [0, 128], sizes = [8, 128], strides = [1, 1]} : vector<8x256xf32> to vector<8x128xf32>
      %72 = vector.extract_strided_slice %55 {offsets = [0, 256], sizes = [8, 128], strides = [1, 1]} : vector<8x384xf32> to vector<8x128xf32>
      %c0_41 = arith.constant 0 : index
      %c0_42 = arith.constant 0 : index
      %73 = vector.load %arg12[%c0_41, %c0_42] : memref<1x128xf32, #tpu.memory_space<vmem>>, vector<1x128xf32>
      %74 = vector.broadcast %73 : vector<1x128xf32> to vector<8x128xf32>
      %75 = arith.addf %72, %74 : vector<8x128xf32>
      %76 = vector.extract_strided_slice %58 {offsets = [0, 256], sizes = [8, 128], strides = [1, 1]} : vector<8x384xf32> to vector<8x128xf32>
      %c0_43 = arith.constant 0 : index
      %c0_44 = arith.constant 0 : index
      %77 = vector.load %arg13[%c0_43, %c0_44] : memref<1x128xf32, #tpu.memory_space<vmem>>, vector<1x128xf32>
      %78 = vector.broadcast %77 : vector<1x128xf32> to vector<8x128xf32>
      %79 = arith.addf %76, %78 : vector<8x128xf32>
      %80 = arith.mulf %70, %79 : vector<8x128xf32>
      %81 = arith.addf %75, %80 : vector<8x128xf32>
      %82 = math.tanh %81 : vector<8x128xf32>
      %cst_45 = arith.constant 1.000000e+00 : f32
      %83 = vector.broadcast %cst_45 : f32 to vector<8x128xf32>
      %84 = arith.subf %83, %71 : vector<8x128xf32>
      %85 = arith.mulf %84, %82 : vector<8x128xf32>
      %86 = arith.mulf %71, %52 : vector<8x128xf32>
      %87 = arith.addf %85, %86 : vector<8x128xf32>
      %c1_46 = arith.constant 1 : index
      %c0_47 = arith.constant 0 : index
      %c0_48 = arith.constant 0 : index
      %88 = vector.load %arg20[%c1_46, %c0_47, %c0_48] : memref<2x8x128xf32, #tpu.memory_space<vmem>>, vector<1x8x128xf32>
      %89 = vector.shape_cast %88 : vector<1x8x128xf32> to vector<8x128xf32>
      %90 = vector.shape_cast %87 : vector<8x128xf32> to vector<1x8x128xf32>
      tpu.vector_store %arg20[%c1_46, %c0_47, %c0_48], %90 {strides = array<i32>} : memref<2x8x128xf32, #tpu.memory_space<vmem>>, vector<1x8x128xf32>,
      %c0_49 = arith.constant 0 : index
      %c0_50 = arith.constant 0 : index
      %91 = vector.load %arg3[%c0_49, %c0_50] : memref<8x128xf32, #tpu.memory_space<vmem>>, vector<8x128xf32>
      %92 = arith.truncf %87 : vector<8x128xf32> to vector<8x128xbf16>
      %c0_51 = arith.constant 0 : index
      %c0_52 = arith.constant 0 : index
      %93 = vector.load %arg14[%c0_51, %c0_52] : memref<128x128xbf16, #tpu.memory_space<vmem>>, vector<128x128xbf16>
      %cst_53 = arith.constant dense<0.000000e+00> : vector<8x128xf32>
      %94 = tpu.matmul %92, %93, %cst_53 {dimension_numbers = #tpu.dot_dimension_numbers<[1], [0], [0], [1], [0, 0, 1, 1], [], []>} : vector<8x128xbf16>, vector<128x128xbf16>, vector<8x128xf32> -> vector<8x128xf32>
      %95 = arith.truncf %91 : vector<8x128xf32> to vector<8x128xbf16>
      %c0_54 = arith.constant 0 : index
      %c0_55 = arith.constant 0 : index
      %96 = vector.load %arg15[%c0_54, %c0_55] : memref<128x128xbf16, #tpu.memory_space<vmem>>, vector<128x128xbf16>
      %cst_56 = arith.constant dense<0.000000e+00> : vector<8x128xf32>
      %97 = tpu.matmul %95, %96, %cst_56 {dimension_numbers = #tpu.dot_dimension_numbers<[1], [0], [0], [1], [0, 0, 1, 1], [], []>} : vector<8x128xbf16>, vector<128x128xbf16>, vector<8x128xf32> -> vector<8x128xf32>
      %98 = arith.addf %94, %97 : vector<8x128xf32>
      %c0_57 = arith.constant 0 : index
      %c0_58 = arith.constant 0 : index
      %99 = vector.load %arg16[%c0_57, %c0_58] : memref<1x128xf32, #tpu.memory_space<vmem>>, vector<1x128xf32>
      %100 = vector.broadcast %99 : vector<1x128xf32> to vector<8x128xf32>
      %101 = arith.addf %98, %100 : vector<8x128xf32>
      %102 = arith.negf %101 : vector<8x128xf32>
      %103 = math.exp %102 : vector<8x128xf32>
      %cst_59 = arith.constant 1.000000e+00 : f32
      %104 = vector.broadcast %cst_59 : f32 to vector<8x128xf32>
      %105 = arith.addf %104, %103 : vector<8x128xf32>
      %106 = arith.divf %104, %105 : vector<8x128xf32>
      %107 = arith.mulf %106, %87 : vector<8x128xf32>
      %cst_60 = arith.constant 1.000000e+00 : f32
      %108 = vector.broadcast %cst_60 : f32 to vector<8x128xf32>
      %109 = arith.subf %108, %106 : vector<8x128xf32>
      %110 = arith.mulf %109, %91 : vector<8x128xf32>
      %111 = arith.addf %107, %110 : vector<8x128xf32>
      %112 = arith.truncf %111 : vector<8x128xf32> to vector<8x128xbf16>
      %c0_61 = arith.constant 0 : index
      %c0_62 = arith.constant 0 : index
      %113 = vector.load %arg21[%c0_61, %c0_62] : memref<8x128xbf16, #tpu.memory_space<vmem>>, vector<8x128xbf16>
      tpu.vector_store %arg21[%c0_61, %c0_62], %112 {strides = array<i32>} : memref<8x128xbf16, #tpu.memory_space<vmem>>, vector<8x128xbf16>,
    } else {
    }
    %c0 = arith.constant 0 : index
    %c0_1 = arith.constant 0 : index
    %3 = vector.load %arg21[%c0, %c0_1] : memref<8x128xbf16, #tpu.memory_space<vmem>>, vector<8x128xbf16>
    %c0_2 = arith.constant 0 : index
    %c0_3 = arith.constant 0 : index
    %4 = vector.load %arg17[%c0_2, %c0_3] : memref<128x128xbf16, #tpu.memory_space<vmem>>, vector<128x128xbf16>
    %cst = arith.constant dense<0.000000e+00> : vector<8x128xf32>
    %5 = tpu.matmul %3, %4, %cst {dimension_numbers = #tpu.dot_dimension_numbers<[1], [0], [0], [1], [0, 0, 1, 1], [], []>} : vector<8x128xbf16>, vector<128x128xbf16>, vector<8x128xf32> -> vector<8x128xf32>
    %c0_4 = arith.constant 0 : index
    %c0_5 = arith.constant 0 : index
    %6 = vector.load %arg18[%c0_4, %c0_5] : memref<1x128xf32, #tpu.memory_space<vmem>>, vector<1x128xf32>
    %7 = vector.broadcast %6 : vector<1x128xf32> to vector<8x128xf32>
    %8 = arith.addf %5, %7 : vector<8x128xf32>
    %c0_6 = arith.constant 0 : index
    %c0_7 = arith.constant 0 : index
    %9 = vector.load %arg19[%c0_6, %c0_7] : memref<8x128xf32, #tpu.memory_space<vmem>>, vector<8x128xf32>
    tpu.vector_store %arg19[%c0_6, %c0_7], %8 {strides = array<i32>} : memref<8x128xf32, #tpu.memory_space<vmem>>, vector<8x128xf32>,
    return
  }
  func.func @transform_0(%arg0: i32) -> (i32, i32) {
    %c0_i32 = arith.constant 0 : i32
    %c0_i32_0 = arith.constant 0 : i32
    %c0_i32_1 = arith.constant 0 : i32
    return %c0_i32, %c0_i32_0 : i32, i32
  }
  func.func @transform_1(%arg0: i32) -> (i32, i32, i32) {
    %c0_i32 = arith.constant 0 : i32
    %c0_i32_0 = arith.constant 0 : i32
    %c0_i32_1 = arith.constant 0 : i32
    %c0_i32_2 = arith.constant 0 : i32
    return %c0_i32, %c0_i32_0, %c0_i32_1 : i32, i32, i32
  }
  func.func @transform_2(%arg0: i32) -> (i32, i32) {
    %c0_i32 = arith.constant 0 : i32
    %c0_i32_0 = arith.constant 0 : i32
    %c0_i32_1 = arith.constant 0 : i32
    return %c0_i32, %c0_i32_0 : i32, i32
  }
  func.func @transform_3(%arg0: i32) -> (i32, i32) {
    %c0_i32 = arith.constant 0 : i32
    %c0_i32_0 = arith.constant 0 : i32
    %c0_i32_1 = arith.constant 0 : i32
    return %c0_i32, %c0_i32_0 : i32, i32
  }
  func.func @transform_4(%arg0: i32) -> (i32, i32) {
    %c0_i32 = arith.constant 0 : i32
    %c0_i32_0 = arith.constant 0 : i32
    %c0_i32_1 = arith.constant 0 : i32
    return %c0_i32, %c0_i32_0 : i32, i32
  }
  func.func @transform_5(%arg0: i32) -> (i32, i32) {
    %c0_i32 = arith.constant 0 : i32
    %c0_i32_0 = arith.constant 0 : i32
    %c0_i32_1 = arith.constant 0 : i32
    return %c0_i32, %c0_i32_0 : i32, i32
  }
  func.func @transform_6(%arg0: i32) -> (i32, i32) {
    %c0_i32 = arith.constant 0 : i32
    %c0_i32_0 = arith.constant 0 : i32
    %c0_i32_1 = arith.constant 0 : i32
    return %c0_i32, %c0_i32_0 : i32, i32
  }
  func.func @transform_7(%arg0: i32) -> (i32, i32) {
    %c0_i32 = arith.constant 0 : i32
    %c0_i32_0 = arith.constant 0 : i32
    %c0_i32_1 = arith.constant 0 : i32
    return %c0_i32, %c0_i32_0 : i32, i32
  }
  func.func @transform_8(%arg0: i32) -> (i32, i32) {
    %c0_i32 = arith.constant 0 : i32
    %c0_i32_0 = arith.constant 0 : i32
    %c0_i32_1 = arith.constant 0 : i32
    return %c0_i32, %c0_i32_0 : i32, i32
  }
  func.func @transform_9(%arg0: i32) -> (i32, i32) {
    %c0_i32 = arith.constant 0 : i32
    %c0_i32_0 = arith.constant 0 : i32
    %c0_i32_1 = arith.constant 0 : i32
    return %c0_i32, %c0_i32_0 : i32, i32
  }
  func.func @transform_10(%arg0: i32) -> (i32, i32) {
    %c0_i32 = arith.constant 0 : i32
    %c0_i32_0 = arith.constant 0 : i32
    %c0_i32_1 = arith.constant 0 : i32
    return %c0_i32, %c0_i32_0 : i32, i32
  }
  func.func @transform_11(%arg0: i32) -> (i32, i32) {
    %c0_i32 = arith.constant 0 : i32
    %c0_i32_0 = arith.constant 0 : i32
    %c0_i32_1 = arith.constant 0 : i32
    return %c0_i32, %c0_i32_0 : i32, i32
  }
  func.func @transform_12(%arg0: i32) -> (i32, i32) {
    %c0_i32 = arith.constant 0 : i32
    %c0_i32_0 = arith.constant 0 : i32
    %c0_i32_1 = arith.constant 0 : i32
    return %c0_i32, %c0_i32_0 : i32, i32
  }
  func.func @transform_13(%arg0: i32) -> (i32, i32) {
    %c0_i32 = arith.constant 0 : i32
    %c0_i32_0 = arith.constant 0 : i32
    %c0_i32_1 = arith.constant 0 : i32
    return %c0_i32, %c0_i32_0 : i32, i32
  }
  func.func @transform_14(%arg0: i32) -> (i32, i32) {
    %c0_i32 = arith.constant 0 : i32
    %c0_i32_0 = arith.constant 0 : i32
    %c0_i32_1 = arith.constant 0 : i32
    return %c0_i32, %c0_i32_0 : i32, i32
  }
  func.func @transform_15(%arg0: i32) -> (i32, i32) {
    %c0_i32 = arith.constant 0 : i32
    %c0_i32_0 = arith.constant 0 : i32
    %c0_i32_1 = arith.constant 0 : i32
    return %c0_i32, %c0_i32_0 : i32, i32
  }
  func.func @transform_16(%arg0: i32) -> (i32, i32) {
    %c0_i32 = arith.constant 0 : i32
    %c0_i32_0 = arith.constant 0 : i32
    return %c0_i32, %arg0 : i32, i32
  }
  func.func @transform_17(%arg0: i32) -> (i32, i32) {
    %c0_i32 = arith.constant 0 : i32
    %c0_i32_0 = arith.constant 0 : i32
    return %c0_i32, %arg0 : i32, i32
  }
  func.func @transform_18(%arg0: i32) -> (i32, i32) {
    %c0_i32 = arith.constant 0 : i32
    %c0_i32_0 = arith.constant 0 : i32
    return %c0_i32, %arg0 : i32, i32
  }
  func.func @transform_19(%arg0: i32) -> (i32, i32, i32) {
    %c0_i32 = arith.constant 0 : i32
    %c0_i32_0 = arith.constant 0 : i32
    %c0_i32_1 = arith.constant 0 : i32
    %c0_i32_2 = arith.constant 0 : i32
    return %c0_i32, %c0_i32_0, %c0_i32_1 : i32, i32, i32
  }
}

</mosaic_0001>

<llo_original>
// kernel: tpu_custom_call.1
$region0: #{tpu_custom_call.1}
  #allocation0 [shape = 'u32[]', space=smem, size = 0x4, offset = 0x4, fixed_abs, tag = 'smem constant byte address 0x4 - core index']
  #allocation1 [shape = 'u32[72,128]{1,0:T(1,128)}', space=vmem, size = 0x9000, scoped, tag = 'internal scratch']
  #allocation2 [shape = 'bf16[8,128]{1,0:T(8,128)(2,1)}', space=vmem, size = 0x800, scoped, tag = 'scratch operand']
  %s0 = inlined_call_operand.hbm [shape: f32[8,128], index: 0, kind: input, shape index: {}]
  %s1 = inlined_call_operand.hbm [shape: f32[2,8,128], index: 1, kind: input, shape index: {}]
  %s2 = inlined_call_operand.hbm [shape: f32[8,128], index: 2, kind: input, shape index: {}]
  %s3 = inlined_call_operand.hbm [shape: bf16[128,384], index: 3, kind: input, shape index: {}]
  %s4 = inlined_call_operand.hbm [shape: bf16[128,384], index: 4, kind: input, shape index: {}]
  %s5 = inlined_call_operand.vmem [shape: f32[1,256], index: 5, kind: input, shape index: {}]
  %s6 = inlined_call_operand.vmem [shape: f32[1,128], index: 6, kind: input, shape index: {}]
  %s7 = inlined_call_operand.vmem [shape: f32[1,128], index: 7, kind: input, shape index: {}]
  %s8 = inlined_call_operand.hbm [shape: bf16[128,384], index: 8, kind: input, shape index: {}]
  %s9 = inlined_call_operand.hbm [shape: bf16[128,384], index: 9, kind: input, shape index: {}]
  %s10 = inlined_call_operand.vmem [shape: f32[1,256], index: 10, kind: input, shape index: {}]
  %s11 = inlined_call_operand.vmem [shape: f32[1,128], index: 11, kind: input, shape index: {}]
  %s12 = inlined_call_operand.vmem [shape: f32[1,128], index: 12, kind: input, shape index: {}]
  %s13 = inlined_call_operand.hbm [shape: bf16[128,128], index: 13, kind: input, shape index: {}]
  %s14 = inlined_call_operand.hbm [shape: bf16[128,128], index: 14, kind: input, shape index: {}]
  %s15 = inlined_call_operand.vmem [shape: f32[1,128], index: 15, kind: input, shape index: {}]
  %s16 = inlined_call_operand.hbm [shape: bf16[128,128], index: 16, kind: input, shape index: {}]
  %s17 = inlined_call_operand.vmem [shape: f32[1,128], index: 17, kind: input, shape index: {}]
  %s18 = inlined_call_operand.hbm [shape: f32[8,128], index: 18, kind: output, shape index: {0}]
  %s19 = inlined_call_operand.hbm [shape: f32[2,8,128], index: 19, kind: output, shape index: {1}]
  %20 = xla_tuple %s18, %s19
  %s21 = sld [smem:[#allocation0]]
  $region134: #{tpu_custom_call.1} parent=0
    _
  %s23 = ssub.s32 1, %s21
  %s24 = scalar_select 0, %s23, %s21
  $region1: #{tpu_custom_call.1} parent=0
    #allocation3 [shape = 'u8[4096]{0}', space=vmem, size = 0x1000, scoped, tag = 'input window, operand 0, single buffered']
    #allocation4 [shape = 's32[1]{0}', space=sflag, size = 0x4, scoped, tag = 'scoped memory for tpu_custom_call.1']
    #allocation5 [shape = 's32[1]{0}', space=sflag, size = 0x4, scoped, tag = 'scoped memory for tpu_custom_call.1']
    #allocation6 [shape = 'u8[8192]{0}', space=vmem, size = 0x2000, scoped, tag = 'input window, operand 1, single buffered']
    #allocation7 [shape = 's32[1]{0}', space=sflag, size = 0x4, scoped, tag = 'scoped memory for tpu_custom_call.1']
    #allocation8 [shape = 'u8[4096]{0}', space=vmem, size = 0x1000, scoped, tag = 'input window, operand 2, single buffered']
    #allocation9 [shape = 'u8[98304]{0}', space=vmem, size = 0x18000, scoped, tag = 'input window, operand 3, single buffered']
    #allocation10 [shape = 's32[1]{0}', space=sflag, size = 0x4, scoped, tag = 'scoped memory for tpu_custom_call.1']
    #allocation11 [shape = 'u8[98304]{0}', space=vmem, size = 0x18000, scoped, tag = 'input window, operand 4, single buffered']
    #allocation12 [shape = 'u8[98304]{0}', space=vmem, size = 0x18000, scoped, tag = 'input window, operand 8, single buffered']
    #allocation13 [shape = 's32[1]{0}', space=sflag, size = 0x4, scoped, tag = 'scoped memory for tpu_custom_call.1']
    #allocation14 [shape = 'u8[98304]{0}', space=vmem, size = 0x18000, scoped, tag = 'input window, operand 9, single buffered']
    #allocation15 [shape = 'u8[32768]{0}', space=vmem, size = 0x8000, scoped, tag = 'input window, operand 13, single buffered']
    #allocation16 [shape = 's32[1]{0}', space=sflag, size = 0x4, scoped, tag = 'scoped memory for tpu_custom_call.1']
    #allocation17 [shape = 'u8[32768]{0}', space=vmem, size = 0x8000, scoped, tag = 'input window, operand 14, single buffered']
    #allocation18 [shape = 'u8[32768]{0}', space=vmem, size = 0x8000, scoped, tag = 'input window, operand 16, single buffered']
    #allocation19 [shape = 's32[1]{0}', space=sflag, size = 0x4, scoped, tag = 'scoped memory for tpu_custom_call.1']
    #allocation20 [shape = 'u8[4096]{0}', space=vmem, size = 0x1000, scoped, tag = 'output window, operand 0, single buffered']
    #allocation21 [shape = 'u8[8192]{0}', space=vmem, size = 0x2000, scoped, tag = 'output window, operand 1, single buffered']
    #allocation22 [shape = 's32[1]{0}', space=sflag, size = 0x4, scoped, tag = 'scoped memory for tpu_custom_call.1']
    %25 = vsyncpa [#allocation4], 0
    %26 = vsyncpa [#allocation7], 0
    %27 = vsyncpa [#allocation10], 0
    %28 = vsyncpa [#allocation13], 0
    %29 = vsyncpa [#allocation16], 0
    %30 = vsyncpa [#allocation19], 0
    %31 = vsyncpa [#allocation5], 0
    %32 = vsyncpa [#allocation22], 0
    // Predicated region
    $region2: #{tpu_custom_call.1} parent=1 // pred_check
      _
    $region3: #{tpu_custom_call.1} parent=1 // pred_check_branch
      %34 = sbr.rel (0) target = $region5
    $region4: #{tpu_custom_call.1} parent=1 // pred_region
      %36 = vsyncadd [#allocation4], 0
      %s38 = sshll.u32 %s0, 4
      %s39 = int_to_ptr.hbm [resolvable:$true] %s38
      %s40 = sshll.u32 [#allocation3], 4
      %s41 = int_to_ptr.vmem [resolvable:$true] %s40
      %43 = dma.hbm_to_vmem [thread:$0]  %s39, 128, %s41, [#allocation4]
    $region5: #{tpu_custom_call.1} parent=1 // pred_fallthru
      _
    // Predicated region
    $region6: #{tpu_custom_call.1} parent=1 // pred_check
      _
    $region7: #{tpu_custom_call.1} parent=1 // pred_check_branch
      %45 = sbr.rel (0) target = $region9
    $region8: #{tpu_custom_call.1} parent=1 // pred_region
      %47 = vsyncadd [#allocation7], 0
      %s48 = sshll.u32 %s1, 4
      %s49 = int_to_ptr.hbm [resolvable:$true] %s48
      %s50 = sshll.u32 [#allocation6], 4
      %s51 = int_to_ptr.vmem [resolvable:$true] %s50
      %56 = dma.hbm_to_vmem [thread:$0]  %s49, 256, %s51, [#allocation7], 128, 128, 8
    $region9: #{tpu_custom_call.1} parent=1 // pred_fallthru
      _
    // Predicated region
    $region10: #{tpu_custom_call.1} parent=1 // pred_check
      _
    $region11: #{tpu_custom_call.1} parent=1 // pred_check_branch
      %58 = sbr.rel (0) target = $region13
    $region12: #{tpu_custom_call.1} parent=1 // pred_region
      %60 = vsyncadd [#allocation7], 0
      %s62 = sshll.u32 %s2, 4
      %s63 = int_to_ptr.hbm [resolvable:$true] %s62
      %s64 = sshll.u32 [#allocation8], 4
      %s65 = int_to_ptr.vmem [resolvable:$true] %s64
      %67 = dma.hbm_to_vmem [thread:$0]  %s63, 128, %s65, [#allocation7]
    $region13: #{tpu_custom_call.1} parent=1 // pred_fallthru
      _
    // Predicated region
    $region14: #{tpu_custom_call.1} parent=1 // pred_check
      _
    $region15: #{tpu_custom_call.1} parent=1 // pred_check_branch
      %69 = sbr.rel (0) target = $region17
    $region16: #{tpu_custom_call.1} parent=1 // pred_region
      %71 = vsyncadd [#allocation10], 0
      %s72 = sshll.u32 %s3, 4
      %s73 = int_to_ptr.hbm [resolvable:$true] %s72
      %s74 = sshll.u32 [#allocation9], 4
      %s75 = int_to_ptr.vmem [resolvable:$true] %s74
      %80 = dma.hbm_to_vmem [thread:$0]  %s73, 3072, %s75, [#allocation10], 192, 192, 12
    $region17: #{tpu_custom_call.1} parent=1 // pred_fallthru
      _
    // Predicated region
    $region18: #{tpu_custom_call.1} parent=1 // pred_check
      _
    $region19: #{tpu_custom_call.1} parent=1 // pred_check_branch
      %82 = sbr.rel (0) target = $region21
    $region20: #{tpu_custom_call.1} parent=1 // pred_region
      %84 = vsyncadd [#allocation10], 0
      %s85 = sshll.u32 %s4, 4
      %s86 = int_to_ptr.hbm [resolvable:$true] %s85
      %s87 = sshll.u32 [#allocation11], 4
      %s88 = int_to_ptr.vmem [resolvable:$true] %s87
      %93 = dma.hbm_to_vmem [thread:$0]  %s86, 3072, %s88, [#allocation10], 192, 192, 12
    $region21: #{tpu_custom_call.1} parent=1 // pred_fallthru
      _
    // Predicated region
    $region22: #{tpu_custom_call.1} parent=1 // pred_check
      _
    $region23: #{tpu_custom_call.1} parent=1 // pred_check_branch
      %95 = sbr.rel (0) target = $region25
    $region24: #{tpu_custom_call.1} parent=1 // pred_region
      _
    $region25: #{tpu_custom_call.1} parent=1 // pred_fallthru
      _
    // Predicated region
    $region26: #{tpu_custom_call.1} parent=1 // pred_check
      _
    $region27: #{tpu_custom_call.1} parent=1 // pred_check_branch
      %97 = sbr.rel (0) target = $region29
    $region28: #{tpu_custom_call.1} parent=1 // pred_region
      _
    $region29: #{tpu_custom_call.1} parent=1 // pred_fallthru
      _
    // Predicated region
    $region30: #{tpu_custom_call.1} parent=1 // pred_check
      _
    $region31: #{tpu_custom_call.1} parent=1 // pred_check_branch
      %99 = sbr.rel (0) target = $region33
    $region32: #{tpu_custom_call.1} parent=1 // pred_region
      _
    $region33: #{tpu_custom_call.1} parent=1 // pred_fallthru
      _
    // Predicated region
    $region34: #{tpu_custom_call.1} parent=1 // pred_check
      _
    $region35: #{tpu_custom_call.1} parent=1 // pred_check_branch
      %101 = sbr.rel (0) target = $region37
    $region36: #{tpu_custom_call.1} parent=1 // pred_region
      %103 = vsyncadd [#allocation13], 0
      %s104 = sshll.u32 %s8, 4
      %s105 = int_to_ptr.hbm [resolvable:$true] %s104
      %s106 = sshll.u32 [#allocation12], 4
      %s107 = int_to_ptr.vmem [resolvable:$true] %s106
      %112 = dma.hbm_to_vmem [thread:$0]  %s105, 3072, %s107, [#allocation13], 192, 192, 12
    $region37: #{tpu_custom_call.1} parent=1 // pred_fallthru
      _
    // Predicated region
    $region38: #{tpu_custom_call.1} parent=1 // pred_check
      _
    $region39: #{tpu_custom_call.1} parent=1 // pred_check_branch
      %114 = sbr.rel (0) target = $region41
    $region40: #{tpu_custom_call.1} parent=1 // pred_region
      %116 = vsyncadd [#allocation13], 0
      %s117 = sshll.u32 %s9, 4
      %s118 = int_to_ptr.hbm [resolvable:$true] %s117
      %s119 = sshll.u32 [#allocation14], 4
      %s120 = int_to_ptr.vmem [resolvable:$true] %s119
      %125 = dma.hbm_to_vmem [thread:$0]  %s118, 3072, %s120, [#allocation13], 192, 192, 12
    $region41: #{tpu_custom_call.1} parent=1 // pred_fallthru
      _
    // Predicated region
    $region42: #{tpu_custom_call.1} parent=1 // pred_check
      _
    $region43: #{tpu_custom_call.1} parent=1 // pred_check_branch
      %127 = sbr.rel (0) target = $region45
    $region44: #{tpu_custom_call.1} parent=1 // pred_region
      _
    $region45: #{tpu_custom_call.1} parent=1 // pred_fallthru
      _
    // Predicated region
    $region46: #{tpu_custom_call.1} parent=1 // pred_check
      _
    $region47: #{tpu_custom_call.1} parent=1 // pred_check_branch
      %129 = sbr.rel (0) target = $region49
    $region48: #{tpu_custom_call.1} parent=1 // pred_region
      _
    $region49: #{tpu_custom_call.1} parent=1 // pred_fallthru
      _
    // Predicated region
    $region50: #{tpu_custom_call.1} parent=1 // pred_check
      _
    $region51: #{tpu_custom_call.1} parent=1 // pred_check_branch
      %131 = sbr.rel (0) target = $region53
    $region52: #{tpu_custom_call.1} parent=1 // pred_region
      _
    $region53: #{tpu_custom_call.1} parent=1 // pred_fallthru
      _
    // Predicated region
    $region54: #{tpu_custom_call.1} parent=1 // pred_check
      _
    $region55: #{tpu_custom_call.1} parent=1 // pred_check_branch
      %133 = sbr.rel (0) target = $region57
    $region56: #{tpu_custom_call.1} parent=1 // pred_region
      %135 = vsyncadd [#allocation16], 0
      %s136 = sshll.u32 %s13, 4
      %s137 = int_to_ptr.hbm [resolvable:$true] %s136
      %s138 = sshll.u32 [#allocation15], 4
      %s139 = int_to_ptr.vmem [resolvable:$true] %s138
      %144 = dma.hbm_to_vmem [thread:$0]  %s137, 1024, %s139, [#allocation16], 64, 64, 4
    $region57: #{tpu_custom_call.1} parent=1 // pred_fallthru
      _
    // Predicated region
    $region58: #{tpu_custom_call.1} parent=1 // pred_check
      _
    $region59: #{tpu_custom_call.1} parent=1 // pred_check_branch
      %146 = sbr.rel (0) target = $region61
    $region60: #{tpu_custom_call.1} parent=1 // pred_region
      %148 = vsyncadd [#allocation16], 0
      %s149 = sshll.u32 %s14, 4
      %s150 = int_to_ptr.hbm [resolvable:$true] %s149
      %s151 = sshll.u32 [#allocation17], 4
      %s152 = int_to_ptr.vmem [resolvable:$true] %s151
      %157 = dma.hbm_to_vmem [thread:$0]  %s150, 1024, %s152, [#allocation16], 64, 64, 4
    $region61: #{tpu_custom_call.1} parent=1 // pred_fallthru
      _
    // Predicated region
    $region62: #{tpu_custom_call.1} parent=1 // pred_check
      _
    $region63: #{tpu_custom_call.1} parent=1 // pred_check_branch
      %159 = sbr.rel (0) target = $region65
    $region64: #{tpu_custom_call.1} parent=1 // pred_region
      _
    $region65: #{tpu_custom_call.1} parent=1 // pred_fallthru
      _
    // Predicated region
    $region66: #{tpu_custom_call.1} parent=1 // pred_check
      _
    $region67: #{tpu_custom_call.1} parent=1 // pred_check_branch
      %161 = sbr.rel (0) target = $region69
    $region68: #{tpu_custom_call.1} parent=1 // pred_region
      %163 = vsyncadd [#allocation19], 0
      %s164 = sshll.u32 %s16, 4
      %s165 = int_to_ptr.hbm [resolvable:$true] %s164
      %s166 = sshll.u32 [#allocation18], 4
      %s167 = int_to_ptr.vmem [resolvable:$true] %s166
      %172 = dma.hbm_to_vmem [thread:$0]  %s165, 1024, %s167, [#allocation19], 64, 64, 4
    $region69: #{tpu_custom_call.1} parent=1 // pred_fallthru
      _
    // Predicated region
    $region70: #{tpu_custom_call.1} parent=1 // pred_check
      _
    $region71: #{tpu_custom_call.1} parent=1 // pred_check_branch
      %174 = sbr.rel (0) target = $region73
    $region72: #{tpu_custom_call.1} parent=1 // pred_region
      _
    $region73: #{tpu_custom_call.1} parent=1 // pred_fallthru
      _
    // Predicated region
    $region74: #{tpu_custom_call.1} parent=1 // pred_check
      _
    $region75: #{tpu_custom_call.1} parent=1 // pred_check_branch
      %176 = sbr.rel (0) target = $region77
    $region76: #{tpu_custom_call.1} parent=1 // pred_region
      %178 = dma.done [#allocation4], 128
    $region77: #{tpu_custom_call.1} parent=1 // pred_fallthru
      _
    // Predicated region
    $region78: #{tpu_custom_call.1} parent=1 // pred_check
      _
    $region79: #{tpu_custom_call.1} parent=1 // pred_check_branch
      %180 = sbr.rel (0) target = $region81
    $region80: #{tpu_custom_call.1} parent=1 // pred_region
      %182 = dma.done [#allocation7], 256
    $region81: #{tpu_custom_call.1} parent=1 // pred_fallthru
      _
    // Predicated region
    $region82: #{tpu_custom_call.1} parent=1 // pred_check
      _
    $region83: #{tpu_custom_call.1} parent=1 // pred_check_branch
      %184 = sbr.rel (0) target = $region85
    $region84: #{tpu_custom_call.1} parent=1 // pred_region
      %186 = dma.done [#allocation7], 128
    $region85: #{tpu_custom_call.1} parent=1 // pred_fallthru
      _
    // Predicated region
    $region86: #{tpu_custom_call.1} parent=1 // pred_check
      _
    $region87: #{tpu_custom_call.1} parent=1 // pred_check_branch
      %188 = sbr.rel (0) target = $region89
    $region88: #{tpu_custom_call.1} parent=1 // pred_region
      %190 = dma.done [#allocation10], 3072
    $region89: #{tpu_custom_call.1} parent=1 // pred_fallthru
      _
    // Predicated region
    $region90: #{tpu_custom_call.1} parent=1 // pred_check
      _
    $region91: #{tpu_custom_call.1} parent=1 // pred_check_branch
      %192 = sbr.rel (0) target = $region93
    $region92: #{tpu_custom_call.1} parent=1 // pred_region
      %194 = dma.done [#allocation10], 3072
    $region93: #{tpu_custom_call.1} parent=1 // pred_fallthru
      _
    // Predicated region
    $region94: #{tpu_custom_call.1} parent=1 // pred_check
      _
    $region95: #{tpu_custom_call.1} parent=1 // pred_check_branch
      %196 = sbr.rel (0) target = $region97
    $region96: #{tpu_custom_call.1} parent=1 // pred_region
      %198 = dma.done [#allocation13], 3072
    $region97: #{tpu_custom_call.1} parent=1 // pred_fallthru
      _
    // Predicated region
    $region98: #{tpu_custom_call.1} parent=1 // pred_check
      _
    $region99: #{tpu_custom_call.1} parent=1 // pred_check_branch
      %200 = sbr.rel (0) target = $region101
    $region100: #{tpu_custom_call.1} parent=1 // pred_region
      %202 = dma.done [#allocation13], 3072
    $region101: #{tpu_custom_call.1} parent=1 // pred_fallthru
      _
    // Predicated region
    $region102: #{tpu_custom_call.1} parent=1 // pred_check
      _
    $region103: #{tpu_custom_call.1} parent=1 // pred_check_branch
      %204 = sbr.rel (0) target = $region105
    $region104: #{tpu_custom_call.1} parent=1 // pred_region
      %206 = dma.done [#allocation16], 1024
    $region105: #{tpu_custom_call.1} parent=1 // pred_fallthru
      _
    // Predicated region
    $region106: #{tpu_custom_call.1} parent=1 // pred_check
      _
    $region107: #{tpu_custom_call.1} parent=1 // pred_check_branch
      %208 = sbr.rel (0) target = $region109
    $region108: #{tpu_custom_call.1} parent=1 // pred_region
      %210 = dma.done [#allocation16], 1024
    $region109: #{tpu_custom_call.1} parent=1 // pred_fallthru
      _
    // Predicated region
    $region110: #{tpu_custom_call.1} parent=1 // pred_check
      _
    $region111: #{tpu_custom_call.1} parent=1 // pred_check_branch
      %212 = sbr.rel (0) target = $region113
    $region112: #{tpu_custom_call.1} parent=1 // pred_region
      %214 = dma.done [#allocation19], 1024
    $region113: #{tpu_custom_call.1} parent=1 // pred_fallthru
      _
    %p215 = scmp.eq.s32.totalorder 0, 0
    // Predicated region
    $region114: #{tpu_custom_call.1} parent=1 // pred_check
      %p216 = pneg %p215
    $region115: #{tpu_custom_call.1} parent=1 // pred_check_branch
      %218 = sbr.rel (%p216) target = $region117
    $region116: #{tpu_custom_call.1} parent=1 // pred_region
      %v219 = vld [vmem:[#allocation3] sm:$0xff]
      %v220 = vld [vmem:[#allocation6] sm:$0xff]
      %v221 = vpack.c.bf16 %v219, %v219
      %v222 = vld [vmem:[#allocation9] sm:$0xff]
      %v223 = vld [vmem:[#allocation9 + $0x8] sm:$0xf]
      %v224 = vld [vmem:[#allocation9 + $0xc] sm:$0xff]
      %v225 = vld [vmem:[#allocation9 + $0x14] sm:$0xf]
      %v226 = vld [vmem:[#allocation9 + $0x18] sm:$0xff]
      %v227 = vld [vmem:[#allocation9 + $0x20] sm:$0xf]
      %v228 = vld [vmem:[#allocation9 + $0x24] sm:$0xff]
      %v229 = vld [vmem:[#allocation9 + $0x2c] sm:$0xf]
      %v230 = vld [vmem:[#allocation9 + $0x30] sm:$0xff]
      %v231 = vld [vmem:[#allocation9 + $0x38] sm:$0xf]
      %v232 = vld [vmem:[#allocation9 + $0x3c] sm:$0xff]
      %v233 = vld [vmem:[#allocation9 + $0x44] sm:$0xf]
      %v234 = vld [vmem:[#allocation9 + $0x48] sm:$0xff]
      %v235 = vld [vmem:[#allocation9 + $0x50] sm:$0xf]
      %v236 = vld [vmem:[#allocation9 + $0x54] sm:$0xff]
      %v237 = vld [vmem:[#allocation9 + $0x5c] sm:$0xf]
      %v238 = vld [vmem:[#allocation9 + $0x60] sm:$0xff]
      %v239 = vld [vmem:[#allocation9 + $0x68] sm:$0xf]
      %v240 = vld [vmem:[#allocation9 + $0x6c] sm:$0xff]
      %v241 = vld [vmem:[#allocation9 + $0x74] sm:$0xf]
      %v242 = vld [vmem:[#allocation9 + $0x78] sm:$0xff]
      %v243 = vld [vmem:[#allocation9 + $0x80] sm:$0xf]
      %v244 = vld [vmem:[#allocation9 + $0x84] sm:$0xff]
      %v245 = vld [vmem:[#allocation9 + $0x8c] sm:$0xf]
      %v246 = vld [vmem:[#allocation9 + $0x90] sm:$0xff]
      %v247 = vld [vmem:[#allocation9 + $0x98] sm:$0xf]
      %v248 = vld [vmem:[#allocation9 + $0x9c] sm:$0xff]
      %v249 = vld [vmem:[#allocation9 + $0xa4] sm:$0xf]
      %v250 = vld [vmem:[#allocation9 + $0xa8] sm:$0xff]
      %v251 = vld [vmem:[#allocation9 + $0xb0] sm:$0xf]
      %v252 = vld [vmem:[#allocation9 + $0xb4] sm:$0xff]
      %v253 = vld [vmem:[#allocation9 + $0xbc] sm:$0xf]
      %v286 = vunpack.c.l.b16 %v222
      %v287 = vunpack.c.h.b16 %v222
      %v288 = vunpack.c.l.b16 %v223
      %v289 = vunpack.c.l.b16 %v224
      %v290 = vunpack.c.h.b16 %v224
      %v291 = vunpack.c.l.b16 %v225
      %v292 = vunpack.c.l.b16 %v226
      %v293 = vunpack.c.h.b16 %v226
      %v294 = vunpack.c.l.b16 %v227
      %v295 = vunpack.c.l.b16 %v228
      %v296 = vunpack.c.h.b16 %v228
      %v297 = vunpack.c.l.b16 %v229
      %v298 = vunpack.c.l.b16 %v230
      %v299 = vunpack.c.h.b16 %v230
      %v300 = vunpack.c.l.b16 %v231
      %v301 = vunpack.c.l.b16 %v232
      %v302 = vunpack.c.h.b16 %v232
      %v303 = vunpack.c.l.b16 %v233
      %v304 = vunpack.c.l.b16 %v234
      %v305 = vunpack.c.h.b16 %v234
      %v306 = vunpack.c.l.b16 %v235
      %v307 = vunpack.c.l.b16 %v236
      %v308 = vunpack.c.h.b16 %v236
      %v309 = vunpack.c.l.b16 %v237
      %v310 = vunpack.c.l.b16 %v238
      %v311 = vunpack.c.h.b16 %v238
      %v312 = vunpack.c.l.b16 %v239
      %v313 = vunpack.c.l.b16 %v240
      %v314 = vunpack.c.h.b16 %v240
      %v315 = vunpack.c.l.b16 %v241
      %v316 = vunpack.c.l.b16 %v242
      %v317 = vunpack.c.h.b16 %v242
      %v318 = vunpack.c.l.b16 %v243
      %v319 = vunpack.c.l.b16 %v244
      %v320 = vunpack.c.h.b16 %v244
      %v321 = vunpack.c.l.b16 %v245
      %v322 = vunpack.c.l.b16 %v246
      %v323 = vunpack.c.h.b16 %v246
      %v324 = vunpack.c.l.b16 %v247
      %v325 = vunpack.c.l.b16 %v248
      %v326 = vunpack.c.h.b16 %v248
      %v327 = vunpack.c.l.b16 %v249
      %v328 = vunpack.c.l.b16 %v250
      %v329 = vunpack.c.h.b16 %v250
      %v330 = vunpack.c.l.b16 %v251
      %v331 = vunpack.c.l.b16 %v252
      %v332 = vunpack.c.h.b16 %v252
      %v333 = vunpack.c.l.b16 %v253
      %v334 = vpack.c.b16 %v289, %v286
      %v335 = vpack.c.b16 %v290, %v287
      %v336 = vpack.c.b16 %v291, %v288
      %v337 = vpack.c.b16 %v295, %v292
      %v338 = vpack.c.b16 %v296, %v293
      %v339 = vpack.c.b16 %v297, %v294
      %v340 = vpack.c.b16 %v301, %v298
      %v341 = vpack.c.b16 %v302, %v299
      %v342 = vpack.c.b16 %v303, %v300
      %v343 = vpack.c.b16 %v307, %v304
      %v344 = vpack.c.b16 %v308, %v305
      %v345 = vpack.c.b16 %v309, %v306
      %v346 = vpack.c.b16 %v313, %v310
      %v347 = vpack.c.b16 %v314, %v311
      %v348 = vpack.c.b16 %v315, %v312
      %v349 = vpack.c.b16 %v319, %v316
      %v350 = vpack.c.b16 %v320, %v317
      %v351 = vpack.c.b16 %v321, %v318
      %v352 = vpack.c.b16 %v325, %v322
      %v353 = vpack.c.b16 %v326, %v323
      %v354 = vpack.c.b16 %v327, %v324
      %v355 = vpack.c.b16 %v331, %v328
      %v356 = vpack.c.b16 %v332, %v329
      %v357 = vpack.c.b16 %v333, %v330
      %382 = vmatpush.bf16.msra.mxu0 %v355
      %383 = vmatpush.bf16.msra.mxu0 %v352
      %384 = vmatpush.bf16.msra.mxu0 %v349
      %385 = vmatpush.bf16.msra.mxu0 %v346
      %386 = vmatpush.bf16.msra.mxu0 %v343
      %387 = vmatpush.bf16.msra.mxu0 %v340
      %388 = vmatpush.bf16.msra.mxu0 %v337
      %389 = vmatpush.bf16.msra.mxu0 %v334
      %390 = vmatmul.bf16.gmra.mxu0 %v221
      %v391 = vpop.f32.mrf.mxu0
      %v392 = vadd.f32 0.0, %v391
      %v393 = vpop.f32.mrf.mxu0
      %394 = vdwg.mxu0
      %395 = vmatpush.bf16.msra.mxu0 %v356
      %396 = vmatpush.bf16.msra.mxu0 %v353
      %397 = vmatpush.bf16.msra.mxu0 %v350
      %398 = vmatpush.bf16.msra.mxu0 %v347
      %399 = vmatpush.bf16.msra.mxu0 %v344
      %400 = vmatpush.bf16.msra.mxu0 %v341
      %401 = vmatpush.bf16.msra.mxu0 %v338
      %402 = vmatpush.bf16.msra.mxu0 %v335
      %403 = vmatmul.bf16.gmra.mxu0 %v221
      %v404 = vpop.f32.mrf.mxu0
      %v405 = vadd.f32 0.0, %v404
      %v406 = vpop.f32.mrf.mxu0
      %407 = vdwg.mxu0
      %408 = vmatpush.bf16.msra.mxu0 %v357
      %409 = vmatpush.bf16.msra.mxu0 %v354
      %410 = vmatpush.bf16.msra.mxu0 %v351
      %411 = vmatpush.bf16.msra.mxu0 %v348
      %412 = vmatpush.bf16.msra.mxu0 %v345
      %413 = vmatpush.bf16.msra.mxu0 %v342
      %414 = vmatpush.bf16.msra.mxu0 %v339
      %415 = vmatpush.bf16.msra.mxu0 %v336
      %416 = vmatmul.bf16.gmra.mxu0 %v221
      %v417 = vpop.f32.mrf.mxu0
      %v418 = vadd.f32 0.0, %v417
      %v419 = vpop.f32.mrf.mxu0
      %420 = vdwg.mxu0
      %v421 = vpack.c.bf16 %v220, %v220
      %v422 = vld [vmem:[#allocation11] sm:$0xff]
      %v423 = vld [vmem:[#allocation11 + $0x8] sm:$0xf]
      %v424 = vld [vmem:[#allocation11 + $0xc] sm:$0xff]
      %v425 = vld [vmem:[#allocation11 + $0x14] sm:$0xf]
      %v426 = vld [vmem:[#allocation11 + $0x18] sm:$0xff]
      %v427 = vld [vmem:[#allocation11 + $0x20] sm:$0xf]
      %v428 = vld [vmem:[#allocation11 + $0x24] sm:$0xff]
      %v429 = vld [vmem:[#allocation11 + $0x2c] sm:$0xf]
      %v430 = vld [vmem:[#allocation11 + $0x30] sm:$0xff]
      %v431 = vld [vmem:[#allocation11 + $0x38] sm:$0xf]
      %v432 = vld [vmem:[#allocation11 + $0x3c] sm:$0xff]
      %v433 = vld [vmem:[#allocation11 + $0x44] sm:$0xf]
      %v434 = vld [vmem:[#allocation11 + $0x48] sm:$0xff]
      %v435 = vld [vmem:[#allocation11 + $0x50] sm:$0xf]
      %v436 = vld [vmem:[#allocation11 + $0x54] sm:$0xff]
      %v437 = vld [vmem:[#allocation11 + $0x5c] sm:$0xf]
      %v438 = vld [vmem:[#allocation11 + $0x60] sm:$0xff]
      %v439 = vld [vmem:[#allocation11 + $0x68] sm:$0xf]
      %v440 = vld [vmem:[#allocation11 + $0x6c] sm:$0xff]
      %v441 = vld [vmem:[#allocation11 + $0x74] sm:$0xf]
      %v442 = vld [vmem:[#allocation11 + $0x78] sm:$0xff]
      %v443 = vld [vmem:[#allocation11 + $0x80] sm:$0xf]
      %v444 = vld [vmem:[#allocation11 + $0x84] sm:$0xff]
      %v445 = vld [vmem:[#allocation11 + $0x8c] sm:$0xf]
      %v446 = vld [vmem:[#allocation11 + $0x90] sm:$0xff]
      %v447 = vld [vmem:[#allocation11 + $0x98] sm:$0xf]
      %v448 = vld [vmem:[#allocation11 + $0x9c] sm:$0xff]
      %v449 = vld [vmem:[#allocation11 + $0xa4] sm:$0xf]
      %v450 = vld [vmem:[#allocation11 + $0xa8] sm:$0xff]
      %v451 = vld [vmem:[#allocation11 + $0xb0] sm:$0xf]
      %v452 = vld [vmem:[#allocation11 + $0xb4] sm:$0xff]
      %v453 = vld [vmem:[#allocation11 + $0xbc] sm:$0xf]
      %v486 = vunpack.c.l.b16 %v422
      %v487 = vunpack.c.h.b16 %v422
      %v488 = vunpack.c.l.b16 %v423
      %v489 = vunpack.c.l.b16 %v424
      %v490 = vunpack.c.h.b16 %v424
      %v491 = vunpack.c.l.b16 %v425
      %v492 = vunpack.c.l.b16 %v426
      %v493 = vunpack.c.h.b16 %v426
      %v494 = vunpack.c.l.b16 %v427
      %v495 = vunpack.c.l.b16 %v428
      %v496 = vunpack.c.h.b16 %v428
      %v497 = vunpack.c.l.b16 %v429
      %v498 = vunpack.c.l.b16 %v430
      %v499 = vunpack.c.h.b16 %v430
      %v500 = vunpack.c.l.b16 %v431
      %v501 = vunpack.c.l.b16 %v432
      %v502 = vunpack.c.h.b16 %v432
      %v503 = vunpack.c.l.b16 %v433
      %v504 = vunpack.c.l.b16 %v434
      %v505 = vunpack.c.h.b16 %v434
      %v506 = vunpack.c.l.b16 %v435
      %v507 = vunpack.c.l.b16 %v436
      %v508 = vunpack.c.h.b16 %v436
      %v509 = vunpack.c.l.b16 %v437
      %v510 = vunpack.c.l.b16 %v438
      %v511 = vunpack.c.h.b16 %v438
      %v512 = vunpack.c.l.b16 %v439
      %v513 = vunpack.c.l.b16 %v440
      %v514 = vunpack.c.h.b16 %v440
      %v515 = vunpack.c.l.b16 %v441
      %v516 = vunpack.c.l.b16 %v442
      %v517 = vunpack.c.h.b16 %v442
      %v518 = vunpack.c.l.b16 %v443
      %v519 = vunpack.c.l.b16 %v444
      %v520 = vunpack.c.h.b16 %v444
      %v521 = vunpack.c.l.b16 %v445
      %v522 = vunpack.c.l.b16 %v446
      %v523 = vunpack.c.h.b16 %v446
      %v524 = vunpack.c.l.b16 %v447
      %v525 = vunpack.c.l.b16 %v448
      %v526 = vunpack.c.h.b16 %v448
      %v527 = vunpack.c.l.b16 %v449
      %v528 = vunpack.c.l.b16 %v450
      %v529 = vunpack.c.h.b16 %v450
      %v530 = vunpack.c.l.b16 %v451
      %v531 = vunpack.c.l.b16 %v452
      %v532 = vunpack.c.h.b16 %v452
      %v533 = vunpack.c.l.b16 %v453
      %v534 = vpack.c.b16 %v489, %v486
      %v535 = vpack.c.b16 %v490, %v487
      %v536 = vpack.c.b16 %v491, %v488
      %v537 = vpack.c.b16 %v495, %v492
      %v538 = vpack.c.b16 %v496, %v493
      %v539 = vpack.c.b16 %v497, %v494
      %v540 = vpack.c.b16 %v501, %v498
      %v541 = vpack.c.b16 %v502, %v499
      %v542 = vpack.c.b16 %v503, %v500
      %v543 = vpack.c.b16 %v507, %v504
      %v544 = vpack.c.b16 %v508, %v505
      %v545 = vpack.c.b16 %v509, %v506
      %v546 = vpack.c.b16 %v513, %v510
      %v547 = vpack.c.b16 %v514, %v511
      %v548 = vpack.c.b16 %v515, %v512
      %v549 = vpack.c.b16 %v519, %v516
      %v550 = vpack.c.b16 %v520, %v517
      %v551 = vpack.c.b16 %v521, %v518
      %v552 = vpack.c.b16 %v525, %v522
      %v553 = vpack.c.b16 %v526, %v523
      %v554 = vpack.c.b16 %v527, %v524
      %v555 = vpack.c.b16 %v531, %v528
      %v556 = vpack.c.b16 %v532, %v529
      %v557 = vpack.c.b16 %v533, %v530
      %582 = vmatpush.bf16.msra.mxu0 %v555
      %583 = vmatpush.bf16.msra.mxu0 %v552
      %584 = vmatpush.bf16.msra.mxu0 %v549
      %585 = vmatpush.bf16.msra.mxu0 %v546
      %586 = vmatpush.bf16.msra.mxu0 %v543
      %587 = vmatpush.bf16.msra.mxu0 %v540
      %588 = vmatpush.bf16.msra.mxu0 %v537
      %589 = vmatpush.bf16.msra.mxu0 %v534
      %590 = vmatmul.bf16.gmra.mxu0 %v421
      %v591 = vpop.f32.mrf.mxu0
      %v592 = vadd.f32 0.0, %v591
      %v593 = vpop.f32.mrf.mxu0
      %594 = vdwg.mxu0
      %595 = vmatpush.bf16.msra.mxu0 %v556
      %596 = vmatpush.bf16.msra.mxu0 %v553
      %597 = vmatpush.bf16.msra.mxu0 %v550
      %598 = vmatpush.bf16.msra.mxu0 %v547
      %599 = vmatpush.bf16.msra.mxu0 %v544
      %600 = vmatpush.bf16.msra.mxu0 %v541
      %601 = vmatpush.bf16.msra.mxu0 %v538
      %602 = vmatpush.bf16.msra.mxu0 %v535
      %603 = vmatmul.bf16.gmra.mxu0 %v421
      %v604 = vpop.f32.mrf.mxu0
      %v605 = vadd.f32 0.0, %v604
      %v606 = vpop.f32.mrf.mxu0
      %607 = vdwg.mxu0
      %608 = vmatpush.bf16.msra.mxu0 %v557
      %609 = vmatpush.bf16.msra.mxu0 %v554
      %610 = vmatpush.bf16.msra.mxu0 %v551
      %611 = vmatpush.bf16.msra.mxu0 %v548
      %612 = vmatpush.bf16.msra.mxu0 %v545
      %613 = vmatpush.bf16.msra.mxu0 %v542
      %614 = vmatpush.bf16.msra.mxu0 %v539
      %615 = vmatpush.bf16.msra.mxu0 %v536
      %616 = vmatmul.bf16.gmra.mxu0 %v421
      %v617 = vpop.f32.mrf.mxu0
      %v618 = vadd.f32 0.0, %v617
      %v619 = vpop.f32.mrf.mxu0
      %620 = vdwg.mxu0
      %v621 = vadd.f32 %v392, %v592
      %v622 = vadd.f32 %v405, %v605
      %v623 = vld [vmem:[%s5] sm:$0x3]
      %v625 = vperm.slane %v623, 0
      %v626 = vperm.slane %v623, 1
      %v629 = vadd.f32 %v621, %v625
      %v630 = vadd.f32 %v622, %v626
      %v631 = vxor.u32 %v629, 2147483648
      %v632 = vxor.u32 %v630, 2147483648
      %v633 = vmul.f32 %v631, 1.442695
      %v634 = vpow.pop %v633
      %v635 = vmul.f32 %v632, 1.442695
      %v636 = vpow.pop %v635
      %v637 = vadd.f32 %v634, 1.0
      %v638 = vadd.f32 %v636, 1.0
      %v639 = vrcp.pop %v637
      %v640 = vmul.f32 %v637, %v639
      %v641 = vsub.f32 1.0, %v640
      %v642 = vmul.f32 %v639, %v641
      %v643 = vadd.f32 %v639, %v642
      %vm644 = vweird.f32 %v637
      %vm645 = vweird.f32 %v639
      %vm646 = vmor %vm644, %vm645
      %v647 = vsel %vm646, %v639, %v643
      %v648 = vand.u32 2147483647, %v637
      %vm649 = vcmp.eq.f32.partialorder %v648, 8.507059e+37
      %v650 = vand.u32 %v637, 2147483648
      %v651 = vor.u32 1.1754944e-38, %v650
      %v652 = vsel %vm649, %v651, %v647
      %v653 = vmul.f32 1.0, %v652
      %v654 = vrcp.pop %v638
      %v655 = vmul.f32 %v638, %v654
      %v656 = vsub.f32 1.0, %v655
      %v657 = vmul.f32 %v654, %v656
      %v658 = vadd.f32 %v654, %v657
      %vm659 = vweird.f32 %v638
      %vm660 = vweird.f32 %v654
      %vm661 = vmor %vm659, %vm660
      %v662 = vsel %vm661, %v654, %v658
      %v663 = vand.u32 2147483647, %v638
      %vm664 = vcmp.eq.f32.partialorder %v663, 8.507059e+37
      %v665 = vand.u32 %v638, 2147483648
      %v666 = vor.u32 1.1754944e-38, %v665
      %v667 = vsel %vm664, %v666, %v662
      %v668 = vmul.f32 1.0, %v667
      %v669 = vld [vmem:[%s6] sm:$0x1]
      %v671 = vperm.slane %v669, 0
      %v673 = vadd.f32 %v418, %v671
      %v674 = vld [vmem:[%s7] sm:$0x1]
      %v676 = vperm.slane %v674, 0
      %v678 = vadd.f32 %v618, %v676
      %v679 = vmul.f32 %v653, %v678
      %v680 = vadd.f32 %v673, %v679
      %v681 = vtanh.pop %v680
      %v682 = vsub.f32 1.0, %v668
      %v683 = vmul.f32 %v682, %v681
      %v684 = vmul.f32 %v668, %v220
      %v685 = vadd.f32 %v683, %v684
      %686 = vst [vmem:[#allocation21] sm:$0xff] %v685
      %s687 = scalar_lea.vmem [#allocation6], 8
      %v688 = vld [vmem:[%s687] sm:$0xff]
      %v689 = vpack.c.bf16 %v685, %v685
      %v690 = vld [vmem:[#allocation12] sm:$0xff]
      %v691 = vld [vmem:[#allocation12 + $0x8] sm:$0xf]
      %v692 = vld [vmem:[#allocation12 + $0xc] sm:$0xff]
      %v693 = vld [vmem:[#allocation12 + $0x14] sm:$0xf]
      %v694 = vld [vmem:[#allocation12 + $0x18] sm:$0xff]
      %v695 = vld [vmem:[#allocation12 + $0x20] sm:$0xf]
      %v696 = vld [vmem:[#allocation12 + $0x24] sm:$0xff]
      %v697 = vld [vmem:[#allocation12 + $0x2c] sm:$0xf]
      %v698 = vld [vmem:[#allocation12 + $0x30] sm:$0xff]
      %v699 = vld [vmem:[#allocation12 + $0x38] sm:$0xf]
      %v700 = vld [vmem:[#allocation12 + $0x3c] sm:$0xff]
      %v701 = vld [vmem:[#allocation12 + $0x44] sm:$0xf]
      %v702 = vld [vmem:[#allocation12 + $0x48] sm:$0xff]
      %v703 = vld [vmem:[#allocation12 + $0x50] sm:$0xf]
      %v704 = vld [vmem:[#allocation12 + $0x54] sm:$0xff]
      %v705 = vld [vmem:[#allocation12 + $0x5c] sm:$0xf]
      %v706 = vld [vmem:[#allocation12 + $0x60] sm:$0xff]
      %v707 = vld [vmem:[#allocation12 + $0x68] sm:$0xf]
      %v708 = vld [vmem:[#allocation12 + $0x6c] sm:$0xff]
      %v709 = vld [vmem:[#allocation12 + $0x74] sm:$0xf]
      %v710 = vld [vmem:[#allocation12 + $0x78] sm:$0xff]
      %v711 = vld [vmem:[#allocation12 + $0x80] sm:$0xf]
      %v712 = vld [vmem:[#allocation12 + $0x84] sm:$0xff]
      %v713 = vld [vmem:[#allocation12 + $0x8c] sm:$0xf]
      %v714 = vld [vmem:[#allocation12 + $0x90] sm:$0xff]
      %v715 = vld [vmem:[#allocation12 + $0x98] sm:$0xf]
      %v716 = vld [vmem:[#allocation12 + $0x9c] sm:$0xff]
      %v717 = vld [vmem:[#allocation12 + $0xa4] sm:$0xf]
      %v718 = vld [vmem:[#allocation12 + $0xa8] sm:$0xff]
      %v719 = vld [vmem:[#allocation12 + $0xb0] sm:$0xf]
      %v720 = vld [vmem:[#allocation12 + $0xb4] sm:$0xff]
      %v721 = vld [vmem:[#allocation12 + $0xbc] sm:$0xf]
      %v754 = vunpack.c.l.b16 %v690
      %v755 = vunpack.c.h.b16 %v690
      %v756 = vunpack.c.l.b16 %v691
      %v757 = vunpack.c.l.b16 %v692
      %v758 = vunpack.c.h.b16 %v692
      %v759 = vunpack.c.l.b16 %v693
      %v760 = vunpack.c.l.b16 %v694
      %v761 = vunpack.c.h.b16 %v694
      %v762 = vunpack.c.l.b16 %v695
      %v763 = vunpack.c.l.b16 %v696
      %v764 = vunpack.c.h.b16 %v696
      %v765 = vunpack.c.l.b16 %v697
      %v766 = vunpack.c.l.b16 %v698
      %v767 = vunpack.c.h.b16 %v698
      %v768 = vunpack.c.l.b16 %v699
      %v769 = vunpack.c.l.b16 %v700
      %v770 = vunpack.c.h.b16 %v700
      %v771 = vunpack.c.l.b16 %v701
      %v772 = vunpack.c.l.b16 %v702
      %v773 = vunpack.c.h.b16 %v702
      %v774 = vunpack.c.l.b16 %v703
      %v775 = vunpack.c.l.b16 %v704
      %v776 = vunpack.c.h.b16 %v704
      %v777 = vunpack.c.l.b16 %v705
      %v778 = vunpack.c.l.b16 %v706
      %v779 = vunpack.c.h.b16 %v706
      %v780 = vunpack.c.l.b16 %v707
      %v781 = vunpack.c.l.b16 %v708
      %v782 = vunpack.c.h.b16 %v708
      %v783 = vunpack.c.l.b16 %v709
      %v784 = vunpack.c.l.b16 %v710
      %v785 = vunpack.c.h.b16 %v710
      %v786 = vunpack.c.l.b16 %v711
      %v787 = vunpack.c.l.b16 %v712
      %v788 = vunpack.c.h.b16 %v712
      %v789 = vunpack.c.l.b16 %v713
      %v790 = vunpack.c.l.b16 %v714
      %v791 = vunpack.c.h.b16 %v714
      %v792 = vunpack.c.l.b16 %v715
      %v793 = vunpack.c.l.b16 %v716
      %v794 = vunpack.c.h.b16 %v716
      %v795 = vunpack.c.l.b16 %v717
      %v796 = vunpack.c.l.b16 %v718
      %v797 = vunpack.c.h.b16 %v718
      %v798 = vunpack.c.l.b16 %v719
      %v799 = vunpack.c.l.b16 %v720
      %v800 = vunpack.c.h.b16 %v720
      %v801 = vunpack.c.l.b16 %v721
      %v802 = vpack.c.b16 %v757, %v754
      %v803 = vpack.c.b16 %v758, %v755
      %v804 = vpack.c.b16 %v759, %v756
      %v805 = vpack.c.b16 %v763, %v760
      %v806 = vpack.c.b16 %v764, %v761
      %v807 = vpack.c.b16 %v765, %v762
      %v808 = vpack.c.b16 %v769, %v766
      %v809 = vpack.c.b16 %v770, %v767
      %v810 = vpack.c.b16 %v771, %v768
      %v811 = vpack.c.b16 %v775, %v772
      %v812 = vpack.c.b16 %v776, %v773
      %v813 = vpack.c.b16 %v777, %v774
      %v814 = vpack.c.b16 %v781, %v778
      %v815 = vpack.c.b16 %v782, %v779
      %v816 = vpack.c.b16 %v783, %v780
      %v817 = vpack.c.b16 %v787, %v784
      %v818 = vpack.c.b16 %v788, %v785
      %v819 = vpack.c.b16 %v789, %v786
      %v820 = vpack.c.b16 %v793, %v790
      %v821 = vpack.c.b16 %v794, %v791
      %v822 = vpack.c.b16 %v795, %v792
      %v823 = vpack.c.b16 %v799, %v796
      %v824 = vpack.c.b16 %v800, %v797
      %v825 = vpack.c.b16 %v801, %v798
      %850 = vmatpush.bf16.msra.mxu0 %v823
      %851 = vmatpush.bf16.msra.mxu0 %v820
      %852 = vmatpush.bf16.msra.mxu0 %v817
      %853 = vmatpush.bf16.msra.mxu0 %v814
      %854 = vmatpush.bf16.msra.mxu0 %v811
      %855 = vmatpush.bf16.msra.mxu0 %v808
      %856 = vmatpush.bf16.msra.mxu0 %v805
      %857 = vmatpush.bf16.msra.mxu0 %v802
      %858 = vmatmul.bf16.gmra.mxu0 %v689
      %v859 = vpop.f32.mrf.mxu0
      %v860 = vadd.f32 0.0, %v859
      %v861 = vpop.f32.mrf.mxu0
      %862 = vdwg.mxu0
      %863 = vmatpush.bf16.msra.mxu0 %v824
      %864 = vmatpush.bf16.msra.mxu0 %v821
      %865 = vmatpush.bf16.msra.mxu0 %v818
      %866 = vmatpush.bf16.msra.mxu0 %v815
      %867 = vmatpush.bf16.msra.mxu0 %v812
      %868 = vmatpush.bf16.msra.mxu0 %v809
      %869 = vmatpush.bf16.msra.mxu0 %v806
      %870 = vmatpush.bf16.msra.mxu0 %v803
      %871 = vmatmul.bf16.gmra.mxu0 %v689
      %v872 = vpop.f32.mrf.mxu0
      %v873 = vadd.f32 0.0, %v872
      %v874 = vpop.f32.mrf.mxu0
      %875 = vdwg.mxu0
      %876 = vmatpush.bf16.msra.mxu0 %v825
      %877 = vmatpush.bf16.msra.mxu0 %v822
      %878 = vmatpush.bf16.msra.mxu0 %v819
      %879 = vmatpush.bf16.msra.mxu0 %v816
      %880 = vmatpush.bf16.msra.mxu0 %v813
      %881 = vmatpush.bf16.msra.mxu0 %v810
      %882 = vmatpush.bf16.msra.mxu0 %v807
      %883 = vmatpush.bf16.msra.mxu0 %v804
      %884 = vmatmul.bf16.gmra.mxu0 %v689
      %v885 = vpop.f32.mrf.mxu0
      %v886 = vadd.f32 0.0, %v885
      %v887 = vpop.f32.mrf.mxu0
      %888 = vdwg.mxu0
      %v889 = vpack.c.bf16 %v688, %v688
      %v890 = vld [vmem:[#allocation14] sm:$0xff]
      %v891 = vld [vmem:[#allocation14 + $0x8] sm:$0xf]
      %v892 = vld [vmem:[#allocation14 + $0xc] sm:$0xff]
      %v893 = vld [vmem:[#allocation14 + $0x14] sm:$0xf]
      %v894 = vld [vmem:[#allocation14 + $0x18] sm:$0xff]
      %v895 = vld [vmem:[#allocation14 + $0x20] sm:$0xf]
      %v896 = vld [vmem:[#allocation14 + $0x24] sm:$0xff]
      %v897 = vld [vmem:[#allocation14 + $0x2c] sm:$0xf]
      %v898 = vld [vmem:[#allocation14 + $0x30] sm:$0xff]
      %v899 = vld [vmem:[#allocation14 + $0x38] sm:$0xf]
      %v900 = vld [vmem:[#allocation14 + $0x3c] sm:$0xff]
      %v901 = vld [vmem:[#allocation14 + $0x44] sm:$0xf]
      %v902 = vld [vmem:[#allocation14 + $0x48] sm:$0xff]
      %v903 = vld [vmem:[#allocation14 + $0x50] sm:$0xf]
      %v904 = vld [vmem:[#allocation14 + $0x54] sm:$0xff]
      %v905 = vld [vmem:[#allocation14 + $0x5c] sm:$0xf]
      %v906 = vld [vmem:[#allocation14 + $0x60] sm:$0xff]
      %v907 = vld [vmem:[#allocation14 + $0x68] sm:$0xf]
      %v908 = vld [vmem:[#allocation14 + $0x6c] sm:$0xff]
      %v909 = vld [vmem:[#allocation14 + $0x74] sm:$0xf]
      %v910 = vld [vmem:[#allocation14 + $0x78] sm:$0xff]
      %v911 = vld [vmem:[#allocation14 + $0x80] sm:$0xf]
      %v912 = vld [vmem:[#allocation14 + $0x84] sm:$0xff]
      %v913 = vld [vmem:[#allocation14 + $0x8c] sm:$0xf]
      %v914 = vld [vmem:[#allocation14 + $0x90] sm:$0xff]
      %v915 = vld [vmem:[#allocation14 + $0x98] sm:$0xf]
      %v916 = vld [vmem:[#allocation14 + $0x9c] sm:$0xff]
      %v917 = vld [vmem:[#allocation14 + $0xa4] sm:$0xf]
      %v918 = vld [vmem:[#allocation14 + $0xa8] sm:$0xff]
      %v919 = vld [vmem:[#allocation14 + $0xb0] sm:$0xf]
      %v920 = vld [vmem:[#allocation14 + $0xb4] sm:$0xff]
      %v921 = vld [vmem:[#allocation14 + $0xbc] sm:$0xf]
      %v954 = vunpack.c.l.b16 %v890
      %v955 = vunpack.c.h.b16 %v890
      %v956 = vunpack.c.l.b16 %v891
      %v957 = vunpack.c.l.b16 %v892
      %v958 = vunpack.c.h.b16 %v892
      %v959 = vunpack.c.l.b16 %v893
      %v960 = vunpack.c.l.b16 %v894
      %v961 = vunpack.c.h.b16 %v894
      %v962 = vunpack.c.l.b16 %v895
      %v963 = vunpack.c.l.b16 %v896
      %v964 = vunpack.c.h.b16 %v896
      %v965 = vunpack.c.l.b16 %v897
      %v966 = vunpack.c.l.b16 %v898
      %v967 = vunpack.c.h.b16 %v898
      %v968 = vunpack.c.l.b16 %v899
      %v969 = vunpack.c.l.b16 %v900
      %v970 = vunpack.c.h.b16 %v900
      %v971 = vunpack.c.l.b16 %v901
      %v972 = vunpack.c.l.b16 %v902
      %v973 = vunpack.c.h.b16 %v902
      %v974 = vunpack.c.l.b16 %v903
      %v975 = vunpack.c.l.b16 %v904
      %v976 = vunpack.c.h.b16 %v904
      %v977 = vunpack.c.l.b16 %v905
      %v978 = vunpack.c.l.b16 %v906
      %v979 = vunpack.c.h.b16 %v906
      %v980 = vunpack.c.l.b16 %v907
      %v981 = vunpack.c.l.b16 %v908
      %v982 = vunpack.c.h.b16 %v908
      %v983 = vunpack.c.l.b16 %v909
      %v984 = vunpack.c.l.b16 %v910
      %v985 = vunpack.c.h.b16 %v910
      %v986 = vunpack.c.l.b16 %v911
      %v987 = vunpack.c.l.b16 %v912
      %v988 = vunpack.c.h.b16 %v912
      %v989 = vunpack.c.l.b16 %v913
      %v990 = vunpack.c.l.b16 %v914
      %v991 = vunpack.c.h.b16 %v914
      %v992 = vunpack.c.l.b16 %v915
      %v993 = vunpack.c.l.b16 %v916
      %v994 = vunpack.c.h.b16 %v916
      %v995 = vunpack.c.l.b16 %v917
      %v996 = vunpack.c.l.b16 %v918
      %v997 = vunpack.c.h.b16 %v918
      %v998 = vunpack.c.l.b16 %v919
      %v999 = vunpack.c.l.b16 %v920
      %v1000 = vunpack.c.h.b16 %v920
      %v1001 = vunpack.c.l.b16 %v921
      %v1002 = vpack.c.b16 %v957, %v954
      %v1003 = vpack.c.b16 %v958, %v955
      %v1004 = vpack.c.b16 %v959, %v956
      %v1005 = vpack.c.b16 %v963, %v960
      %v1006 = vpack.c.b16 %v964, %v961
      %v1007 = vpack.c.b16 %v965, %v962
      %v1008 = vpack.c.b16 %v969, %v966
      %v1009 = vpack.c.b16 %v970, %v967
      %v1010 = vpack.c.b16 %v971, %v968
      %v1011 = vpack.c.b16 %v975, %v972
      %v1012 = vpack.c.b16 %v976, %v973
      %v1013 = vpack.c.b16 %v977, %v974
      %v1014 = vpack.c.b16 %v981, %v978
      %v1015 = vpack.c.b16 %v982, %v979
      %v1016 = vpack.c.b16 %v983, %v980
      %v1017 = vpack.c.b16 %v987, %v984
      %v1018 = vpack.c.b16 %v988, %v985
      %v1019 = vpack.c.b16 %v989, %v986
      %v1020 = vpack.c.b16 %v993, %v990
      %v1021 = vpack.c.b16 %v994, %v991
      %v1022 = vpack.c.b16 %v995, %v992
      %v1023 = vpack.c.b16 %v999, %v996
      %v1024 = vpack.c.b16 %v1000, %v997
      %v1025 = vpack.c.b16 %v1001, %v998
      %1050 = vmatpush.bf16.msra.mxu0 %v1023
      %1051 = vmatpush.bf16.msra.mxu0 %v1020
      %1052 = vmatpush.bf16.msra.mxu0 %v1017
      %1053 = vmatpush.bf16.msra.mxu0 %v1014
      %1054 = vmatpush.bf16.msra.mxu0 %v1011
      %1055 = vmatpush.bf16.msra.mxu0 %v1008
      %1056 = vmatpush.bf16.msra.mxu0 %v1005
      %1057 = vmatpush.bf16.msra.mxu0 %v1002
      %1058 = vmatmul.bf16.gmra.mxu0 %v889
      %v1059 = vpop.f32.mrf.mxu0
      %v1060 = vadd.f32 0.0, %v1059
      %v1061 = vpop.f32.mrf.mxu0
      %1062 = vdwg.mxu0
      %1063 = vmatpush.bf16.msra.mxu0 %v1024
      %1064 = vmatpush.bf16.msra.mxu0 %v1021
      %1065 = vmatpush.bf16.msra.mxu0 %v1018
      %1066 = vmatpush.bf16.msra.mxu0 %v1015
      %1067 = vmatpush.bf16.msra.mxu0 %v1012
      %1068 = vmatpush.bf16.msra.mxu0 %v1009
      %1069 = vmatpush.bf16.msra.mxu0 %v1006
      %1070 = vmatpush.bf16.msra.mxu0 %v1003
      %1071 = vmatmul.bf16.gmra.mxu0 %v889
      %v1072 = vpop.f32.mrf.mxu0
      %v1073 = vadd.f32 0.0, %v1072
      %v1074 = vpop.f32.mrf.mxu0
      %1075 = vdwg.mxu0
      %1076 = vmatpush.bf16.msra.mxu0 %v1025
      %1077 = vmatpush.bf16.msra.mxu0 %v1022
      %1078 = vmatpush.bf16.msra.mxu0 %v1019
      %1079 = vmatpush.bf16.msra.mxu0 %v1016
      %1080 = vmatpush.bf16.msra.mxu0 %v1013
      %1081 = vmatpush.bf16.msra.mxu0 %v1010
      %1082 = vmatpush.bf16.msra.mxu0 %v1007
      %1083 = vmatpush.bf16.msra.mxu0 %v1004
      %1084 = vmatmul.bf16.gmra.mxu0 %v889
      %v1085 = vpop.f32.mrf.mxu0
      %v1086 = vadd.f32 0.0, %v1085
      %v1087 = vpop.f32.mrf.mxu0
      %1088 = vdwg.mxu0
      %v1089 = vadd.f32 %v860, %v1060
      %v1090 = vadd.f32 %v873, %v1073
      %v1091 = vld [vmem:[%s10] sm:$0x3]
      %v1093 = vperm.slane %v1091, 0
      %v1094 = vperm.slane %v1091, 1
      %v1097 = vadd.f32 %v1089, %v1093
      %v1098 = vadd.f32 %v1090, %v1094
      %v1099 = vxor.u32 %v1097, 2147483648
      %v1100 = vxor.u32 %v1098, 2147483648
      %v1101 = vmul.f32 %v1099, 1.442695
      %v1102 = vpow.pop %v1101
      %v1103 = vmul.f32 %v1100, 1.442695
      %v1104 = vpow.pop %v1103
      %v1105 = vadd.f32 %v1102, 1.0
      %v1106 = vadd.f32 %v1104, 1.0
      %v1107 = vrcp.pop %v1105
      %v1108 = vmul.f32 %v1105, %v1107
      %v1109 = vsub.f32 1.0, %v1108
      %v1110 = vmul.f32 %v1107, %v1109
      %v1111 = vadd.f32 %v1107, %v1110
      %vm1112 = vweird.f32 %v1105
      %vm1113 = vweird.f32 %v1107
      %vm1114 = vmor %vm1112, %vm1113
      %v1115 = vsel %vm1114, %v1107, %v1111
      %v1116 = vand.u32 2147483647, %v1105
      %vm1117 = vcmp.eq.f32.partialorder %v1116, 8.507059e+37
      %v1118 = vand.u32 %v1105, 2147483648
      %v1119 = vor.u32 1.1754944e-38, %v1118
      %v1120 = vsel %vm1117, %v1119, %v1115
      %v1121 = vmul.f32 1.0, %v1120
      %v1122 = vrcp.pop %v1106
      %v1123 = vmul.f32 %v1106, %v1122
      %v1124 = vsub.f32 1.0, %v1123
      %v1125 = vmul.f32 %v1122, %v1124
      %v1126 = vadd.f32 %v1122, %v1125
      %vm1127 = vweird.f32 %v1106
      %vm1128 = vweird.f32 %v1122
      %vm1129 = vmor %vm1127, %vm1128
      %v1130 = vsel %vm1129, %v1122, %v1126
      %v1131 = vand.u32 2147483647, %v1106
      %vm1132 = vcmp.eq.f32.partialorder %v1131, 8.507059e+37
      %v1133 = vand.u32 %v1106, 2147483648
      %v1134 = vor.u32 1.1754944e-38, %v1133
      %v1135 = vsel %vm1132, %v1134, %v1130
      %v1136 = vmul.f32 1.0, %v1135
      %v1137 = vld [vmem:[%s11] sm:$0x1]
      %v1139 = vperm.slane %v1137, 0
      %v1141 = vadd.f32 %v886, %v1139
      %v1142 = vld [vmem:[%s12] sm:$0x1]
      %v1144 = vperm.slane %v1142, 0
      %v1146 = vadd.f32 %v1086, %v1144
      %v1147 = vmul.f32 %v1121, %v1146
      %v1148 = vadd.f32 %v1141, %v1147
      %v1149 = vtanh.pop %v1148
      %v1150 = vsub.f32 1.0, %v1136
      %v1151 = vmul.f32 %v1150, %v1149
      %v1152 = vmul.f32 %v1136, %v688
      %v1153 = vadd.f32 %v1151, %v1152
      %s1154 = scalar_lea.vmem [#allocation21], 8
      %1155 = vst [vmem:[%s1154] sm:$0xff] %v1153
      %v1156 = vld [vmem:[#allocation8] sm:$0xff]
      %v1157 = vpack.c.bf16 %v1153, %v1153
      %v1158 = vld [vmem:[#allocation15] sm:$0xf]
      %v1159 = vld [vmem:[#allocation15 + $0x4] sm:$0xf]
      %v1160 = vld [vmem:[#allocation15 + $0x8] sm:$0xf]
      %v1161 = vld [vmem:[#allocation15 + $0xc] sm:$0xf]
      %v1162 = vld [vmem:[#allocation15 + $0x10] sm:$0xf]
      %v1163 = vld [vmem:[#allocation15 + $0x14] sm:$0xf]
      %v1164 = vld [vmem:[#allocation15 + $0x18] sm:$0xf]
      %v1165 = vld [vmem:[#allocation15 + $0x1c] sm:$0xf]
      %v1166 = vld [vmem:[#allocation15 + $0x20] sm:$0xf]
      %v1167 = vld [vmem:[#allocation15 + $0x24] sm:$0xf]
      %v1168 = vld [vmem:[#allocation15 + $0x28] sm:$0xf]
      %v1169 = vld [vmem:[#allocation15 + $0x2c] sm:$0xf]
      %v1170 = vld [vmem:[#allocation15 + $0x30] sm:$0xf]
      %v1171 = vld [vmem:[#allocation15 + $0x34] sm:$0xf]
      %v1172 = vld [vmem:[#allocation15 + $0x38] sm:$0xf]
      %v1173 = vld [vmem:[#allocation15 + $0x3c] sm:$0xf]
      %v1174 = vpack.c.bf16 %v1156, %v1156
      %v1175 = vld [vmem:[#allocation17] sm:$0xf]
      %v1176 = vld [vmem:[#allocation17 + $0x4] sm:$0xf]
      %v1177 = vld [vmem:[#allocation17 + $0x8] sm:$0xf]
      %v1178 = vld [vmem:[#allocation17 + $0xc] sm:$0xf]
      %v1179 = vld [vmem:[#allocation17 + $0x10] sm:$0xf]
      %v1180 = vld [vmem:[#allocation17 + $0x14] sm:$0xf]
      %v1181 = vld [vmem:[#allocation17 + $0x18] sm:$0xf]
      %v1182 = vld [vmem:[#allocation17 + $0x1c] sm:$0xf]
      %v1183 = vld [vmem:[#allocation17 + $0x20] sm:$0xf]
      %v1184 = vld [vmem:[#allocation17 + $0x24] sm:$0xf]
      %v1185 = vld [vmem:[#allocation17 + $0x28] sm:$0xf]
      %v1186 = vld [vmem:[#allocation17 + $0x2c] sm:$0xf]
      %v1187 = vld [vmem:[#allocation17 + $0x30] sm:$0xf]
      %v1188 = vld [vmem:[#allocation17 + $0x34] sm:$0xf]
      %v1189 = vld [vmem:[#allocation17 + $0x38] sm:$0xf]
      %v1190 = vld [vmem:[#allocation17 + $0x3c] sm:$0xf]
      %v1207 = vunpack.c.l.b16 %v1175
      %v1208 = vunpack.c.l.b16 %v1176
      %v1209 = vunpack.c.l.b16 %v1177
      %v1210 = vunpack.c.l.b16 %v1178
      %v1211 = vunpack.c.l.b16 %v1179
      %v1212 = vunpack.c.l.b16 %v1180
      %v1213 = vunpack.c.l.b16 %v1181
      %v1214 = vunpack.c.l.b16 %v1182
      %v1215 = vunpack.c.l.b16 %v1183
      %v1216 = vunpack.c.l.b16 %v1184
      %v1217 = vunpack.c.l.b16 %v1185
      %v1218 = vunpack.c.l.b16 %v1186
      %v1219 = vunpack.c.l.b16 %v1187
      %v1220 = vunpack.c.l.b16 %v1188
      %v1221 = vunpack.c.l.b16 %v1189
      %v1222 = vunpack.c.l.b16 %v1190
      %v1223 = vpack.c.b16 %v1208, %v1207
      %v1224 = vpack.c.b16 %v1210, %v1209
      %v1225 = vpack.c.b16 %v1212, %v1211
      %v1226 = vpack.c.b16 %v1214, %v1213
      %v1227 = vpack.c.b16 %v1216, %v1215
      %v1228 = vpack.c.b16 %v1218, %v1217
      %v1229 = vpack.c.b16 %v1220, %v1219
      %v1230 = vpack.c.b16 %v1222, %v1221
      %1239 = vmatpush.bf16.msra.mxu0 %v1230
      %1240 = vmatpush.bf16.msra.mxu0 %v1229
      %1241 = vmatpush.bf16.msra.mxu0 %v1228
      %1242 = vmatpush.bf16.msra.mxu0 %v1227
      %1243 = vmatpush.bf16.msra.mxu0 %v1226
      %1244 = vmatpush.bf16.msra.mxu0 %v1225
      %1245 = vmatpush.bf16.msra.mxu0 %v1224
      %1246 = vmatpush.bf16.msra.mxu0 %v1223
      %1247 = vmatmul.bf16.gmra.mxu0 %v1174
      %v1248 = vpop.f32.mrf.mxu0
      %v1249 = vadd.f32 0.0, %v1248
      %v1250 = vpop.f32.mrf.mxu0
      %1251 = vdwg.mxu0
      %v1268 = vunpack.c.l.b16 %v1158
      %v1269 = vunpack.c.l.b16 %v1159
      %v1270 = vunpack.c.l.b16 %v1160
      %v1271 = vunpack.c.l.b16 %v1161
      %v1272 = vunpack.c.l.b16 %v1162
      %v1273 = vunpack.c.l.b16 %v1163
      %v1274 = vunpack.c.l.b16 %v1164
      %v1275 = vunpack.c.l.b16 %v1165
      %v1276 = vunpack.c.l.b16 %v1166
      %v1277 = vunpack.c.l.b16 %v1167
      %v1278 = vunpack.c.l.b16 %v1168
      %v1279 = vunpack.c.l.b16 %v1169
      %v1280 = vunpack.c.l.b16 %v1170
      %v1281 = vunpack.c.l.b16 %v1171
      %v1282 = vunpack.c.l.b16 %v1172
      %v1283 = vunpack.c.l.b16 %v1173
      %v1284 = vpack.c.b16 %v1269, %v1268
      %v1285 = vpack.c.b16 %v1271, %v1270
      %v1286 = vpack.c.b16 %v1273, %v1272
      %v1287 = vpack.c.b16 %v1275, %v1274
      %v1288 = vpack.c.b16 %v1277, %v1276
      %v1289 = vpack.c.b16 %v1279, %v1278
      %v1290 = vpack.c.b16 %v1281, %v1280
      %v1291 = vpack.c.b16 %v1283, %v1282
      %1300 = vmatpush.bf16.msra.mxu0 %v1291
      %1301 = vmatpush.bf16.msra.mxu0 %v1290
      %1302 = vmatpush.bf16.msra.mxu0 %v1289
      %1303 = vmatpush.bf16.msra.mxu0 %v1288
      %1304 = vmatpush.bf16.msra.mxu0 %v1287
      %1305 = vmatpush.bf16.msra.mxu0 %v1286
      %1306 = vmatpush.bf16.msra.mxu0 %v1285
      %1307 = vmatpush.bf16.msra.mxu0 %v1284
      %1308 = vmatmul.bf16.gmra.mxu0 %v1157
      %v1309 = vpop.f32.mrf.mxu0
      %v1310 = vadd.f32 %v1249, %v1309
      %v1311 = vpop.f32.mrf.mxu0
      %1312 = vdwg.mxu0
      %v1313 = vld [vmem:[%s15] sm:$0x1]
      %v1315 = vperm.slane %v1313, 0
      %v1317 = vadd.f32 %v1310, %v1315
      %v1318 = vxor.u32 %v1317, 2147483648
      %v1319 = vmul.f32 %v1318, 1.442695
      %v1320 = vpow.pop %v1319
      %v1321 = vadd.f32 %v1320, 1.0
      %v1322 = vrcp.pop %v1321
      %v1323 = vmul.f32 %v1321, %v1322
      %v1324 = vsub.f32 1.0, %v1323
      %v1325 = vmul.f32 %v1322, %v1324
      %v1326 = vadd.f32 %v1322, %v1325
      %vm1327 = vweird.f32 %v1321
      %vm1328 = vweird.f32 %v1322
      %vm1329 = vmor %vm1327, %vm1328
      %v1330 = vsel %vm1329, %v1322, %v1326
      %v1331 = vand.u32 2147483647, %v1321
      %vm1332 = vcmp.eq.f32.partialorder %v1331, 8.507059e+37
      %v1333 = vand.u32 %v1321, 2147483648
      %v1334 = vor.u32 1.1754944e-38, %v1333
      %v1335 = vsel %vm1332, %v1334, %v1330
      %v1336 = vmul.f32 1.0, %v1335
      %v1337 = vmul.f32 %v1336, %v1153
      %v1338 = vsub.f32 1.0, %v1336
      %v1339 = vmul.f32 %v1338, %v1156
      %v1340 = vadd.f32 %v1337, %v1339
      %v1341 = vpack.c.bf16 %v1340, %v1340
      %1342 = vst [vmem:[#allocation2] sm:$0xf] %v1341
    $region117: #{tpu_custom_call.1} parent=1 // pred_fallthru
      _
    %v1343 = vld [vmem:[#allocation2] sm:$0xf]
    %v1344 = vld [vmem:[#allocation18] sm:$0xf]
    %v1345 = vld [vmem:[#allocation18 + $0x4] sm:$0xf]
    %v1346 = vld [vmem:[#allocation18 + $0x8] sm:$0xf]
    %v1347 = vld [vmem:[#allocation18 + $0xc] sm:$0xf]
    %v1348 = vld [vmem:[#allocation18 + $0x10] sm:$0xf]
    %v1349 = vld [vmem:[#allocation18 + $0x14] sm:$0xf]
    %v1350 = vld [vmem:[#allocation18 + $0x18] sm:$0xf]
    %v1351 = vld [vmem:[#allocation18 + $0x1c] sm:$0xf]
    %v1352 = vld [vmem:[#allocation18 + $0x20] sm:$0xf]
    %v1353 = vld [vmem:[#allocation18 + $0x24] sm:$0xf]
    %v1354 = vld [vmem:[#allocation18 + $0x28] sm:$0xf]
    %v1355 = vld [vmem:[#allocation18 + $0x2c] sm:$0xf]
    %v1356 = vld [vmem:[#allocation18 + $0x30] sm:$0xf]
    %v1357 = vld [vmem:[#allocation18 + $0x34] sm:$0xf]
    %v1358 = vld [vmem:[#allocation18 + $0x38] sm:$0xf]
    %v1359 = vld [vmem:[#allocation18 + $0x3c] sm:$0xf]
    %v1360 = vld [vmem:[%s17] sm:$0x1]
    %v1362 = vperm.slane %v1360, 0
    %v1380 = vunpack.c.l.b16 %v1344
    %v1381 = vunpack.c.l.b16 %v1345
    %v1382 = vunpack.c.l.b16 %v1346
    %v1383 = vunpack.c.l.b16 %v1347
    %v1384 = vunpack.c.l.b16 %v1348
    %v1385 = vunpack.c.l.b16 %v1349
    %v1386 = vunpack.c.l.b16 %v1350
    %v1387 = vunpack.c.l.b16 %v1351
    %v1388 = vunpack.c.l.b16 %v1352
    %v1389 = vunpack.c.l.b16 %v1353
    %v1390 = vunpack.c.l.b16 %v1354
    %v1391 = vunpack.c.l.b16 %v1355
    %v1392 = vunpack.c.l.b16 %v1356
    %v1393 = vunpack.c.l.b16 %v1357
    %v1394 = vunpack.c.l.b16 %v1358
    %v1395 = vunpack.c.l.b16 %v1359
    %v1396 = vpack.c.b16 %v1381, %v1380
    %v1397 = vpack.c.b16 %v1383, %v1382
    %v1398 = vpack.c.b16 %v1385, %v1384
    %v1399 = vpack.c.b16 %v1387, %v1386
    %v1400 = vpack.c.b16 %v1389, %v1388
    %v1401 = vpack.c.b16 %v1391, %v1390
    %v1402 = vpack.c.b16 %v1393, %v1392
    %v1403 = vpack.c.b16 %v1395, %v1394
    %1412 = vmatpush.bf16.msra.mxu0 %v1403
    %1413 = vmatpush.bf16.msra.mxu0 %v1402
    %1414 = vmatpush.bf16.msra.mxu0 %v1401
    %1415 = vmatpush.bf16.msra.mxu0 %v1400
    %1416 = vmatpush.bf16.msra.mxu0 %v1399
    %1417 = vmatpush.bf16.msra.mxu0 %v1398
    %1418 = vmatpush.bf16.msra.mxu0 %v1397
    %1419 = vmatpush.bf16.msra.mxu0 %v1396
    %1420 = vmatmul.bf16.gmra.mxu0 %v1343
    %v1421 = vpop.f32.mrf.mxu0
    %v1422 = vadd.f32 %v1362, %v1421
    %v1423 = vpop.f32.mrf.mxu0
    %1424 = vdwg.mxu0
    %1425 = vst [vmem:[#allocation20] sm:$0xff] %v1422
    // Predicated region
    $region118: #{tpu_custom_call.1} parent=1 // pred_check
      _
    $region119: #{tpu_custom_call.1} parent=1 // pred_check_branch
      %1427 = sbr.rel (0) target = $region121
    $region120: #{tpu_custom_call.1} parent=1 // pred_region
      %1429 = vsyncadd [#allocation5], 0
      %s1431 = sshll.u32 [#allocation20], 4
      %s1432 = int_to_ptr.vmem [resolvable:$true] %s1431
      %s1433 = sshll.u32 %s18, 4
      %s1434 = int_to_ptr.hbm [resolvable:$true] %s1433
      %1436 = dma.vmem_to_hbm [thread:$0]  %s1432, 128, %s1434, [#allocation5]
    $region121: #{tpu_custom_call.1} parent=1 // pred_fallthru
      _
    // Predicated region
    $region122: #{tpu_custom_call.1} parent=1 // pred_check
      _
    $region123: #{tpu_custom_call.1} parent=1 // pred_check_branch
      %1438 = sbr.rel (0) target = $region125
    $region124: #{tpu_custom_call.1} parent=1 // pred_region
      %1440 = vsyncadd [#allocation22], 0
      %s1441 = sshll.u32 [#allocation21], 4
      %s1442 = int_to_ptr.vmem [resolvable:$true] %s1441
      %s1443 = sshll.u32 %s19, 4
      %s1444 = int_to_ptr.hbm [resolvable:$true] %s1443
      %1449 = dma.vmem_to_hbm [thread:$0]  %s1442, 256, %s1444, [#allocation22], 128, 128, 8
    $region125: #{tpu_custom_call.1} parent=1 // pred_fallthru
      _
    // Predicated region
    $region126: #{tpu_custom_call.1} parent=1 // pred_check
      _
    $region127: #{tpu_custom_call.1} parent=1 // pred_check_branch
      %1451 = sbr.rel (0) target = $region129
    $region128: #{tpu_custom_call.1} parent=1 // pred_region
      %1453 = dma.done [#allocation5], 128
    $region129: #{tpu_custom_call.1} parent=1 // pred_fallthru
      _
    // Predicated region
    $region130: #{tpu_custom_call.1} parent=1 // pred_check
      _
    $region131: #{tpu_custom_call.1} parent=1 // pred_check_branch
      %1455 = sbr.rel (0) target = $region133
    $region132: #{tpu_custom_call.1} parent=1 // pred_region
      %1457 = dma.done [#allocation22], 256
    $region133: #{tpu_custom_call.1} parent=1 // pred_fallthru
      _
    %1458 = vsyncpa [#allocation4], 1
    %1459 = vsyncpa [#allocation7], 1
    %1460 = vsyncpa [#allocation10], 1
    %1461 = vsyncpa [#allocation13], 1
    %1462 = vsyncpa [#allocation16], 1
    %1463 = vsyncpa [#allocation19], 1
    %1464 = vsyncpa [#allocation5], 1
    %1465 = vsyncpa [#allocation22], 1

</llo_original>
